<compile_context>
chip_gen: v7x
topology: tpu7x:2x2x1
jax: 0.10.0
libtpu: 0.0.40
codegen_flags: <defaults>
</compile_context>

<pallas_src>
import jax
import jax.numpy as jnp
from jax import lax
from jax.experimental import pallas as pl
from jax.experimental.pallas import tpu as pltpu


def _qst_lstm_fc_kernel(pg0_ref, w_hh0_ref, w_cat_ref, b_ref, fc_w_ref,
                        fc_b_ref, out_ref, feat_ref):
    """LSTM recurrence + FC head for one batch block.

    pg0_ref  : (T, TB, 4H) bf16  precomputed layer-0 gates (tanh(x)@W_ih0 + b0)
    w_hh0_ref: (H, 4H) bf16      layer-0 hidden->gate weights
    w_cat_ref: (max(L-1,1), 2H, 4H) bf16  fused [W_ih; W_hh] for layers >= 1
    b_ref    : (L, 1, 4H) f32    biases (layer-0 entry unused, folded in pg0)
    fc_w_ref : (2*L*H, E_pad) bf16
    fc_b_ref : (1, E_pad) f32
    out_ref  : (TB, E_pad) f32
    feat_ref : (TB, 2*L*H) f32 VMEM scratch for the [h|c] feature slab
    Gate column order is [i, f, o, g] (permuted once in the wrapper).
    """
    T, TB, G = pg0_ref.shape
    H = w_hh0_ref.shape[0]
    L = b_ref.shape[0]
    H3 = 3 * H

    # Loop-invariant loads / broadcasts hoisted out of the serial time loop.
    w_hh0 = w_hh0_ref[...]                                         # (H, 4H) bf16
    w_cat = [None] + [w_cat_ref[l - 1] for l in range(1, L)]       # (2H, 4H) bf16
    bias = [None] + [jnp.broadcast_to(b_ref[l], (TB, G)) for l in range(1, L)]

    def cell(gates, c_prev):
        # columns [i | f | o | g]: one tanh-based sigmoid pass (3H) + one tanh (H).
        sig = 0.5 * jnp.tanh(0.5 * gates[:, :H3]) + 0.5
        g_g = jnp.tanh(gates[:, H3:])
        i_g = sig[:, :H]
        f_g = sig[:, H:2 * H]
        o_g = sig[:, 2 * H:H3]
        c_new = f_g * c_prev + i_g * g_g
        h_new = o_g * jnp.tanh(c_new)
        return h_new, c_new

    def step(t, carry):
        hs, cs = carry
        new_hs, new_cs = [], []
        # Layer 0: input projection + bias precomputed; only h @ W_hh remains.
        gates0 = (pg0_ref[t].astype(jnp.float32)
                  + jnp.dot(hs[0].astype(jnp.bfloat16), w_hh0,
                            preferred_element_type=jnp.float32))
        h, c = cell(gates0, cs[0])
        new_hs.append(h)
        new_cs.append(c)
        for l in range(1, L):                       # static unroll over layers
            inp = jnp.concatenate([new_hs[l - 1], hs[l]],
                                  axis=1).astype(jnp.bfloat16)      # (TB, 2H)
            gates = (jnp.dot(inp, w_cat[l], preferred_element_type=jnp.float32)
                     + bias[l])
            h, c = cell(gates, cs[l])
            new_hs.append(h)
            new_cs.append(c)
        return tuple(new_hs), tuple(new_cs)

    zeros = tuple(jnp.zeros((TB, H), jnp.float32) for _ in range(L))
    # Full unroll only for small T*L; partial unroll bounds vreg pressure.
    unroll = True if T * L <= 64 else 2
    hs, cs = lax.fori_loop(0, T, step, (zeros, zeros), unroll=unroll)

    # cat((hidden, cell), dim=2).transpose(0,1).reshape(B, -1)
    #   -> per batch row: [h0 | c0 | h1 | c1 | ...], written at static offsets.
    for l in range(L):
        feat_ref[:, 2 * l * H:(2 * l + 1) * H] = hs[l]
        feat_ref[:, (2 * l + 1) * H:(2 * l + 2) * H] = cs[l]
    feat = jnp.tanh(feat_ref[...]).astype(jnp.bfloat16)
    out_ref[...] = (jnp.dot(feat, fc_w_ref[...],
                            preferred_element_type=jnp.float32)
                    + fc_b_ref[...]).astype(out_ref.dtype)


def _pick_batch_block(B, T, G, E_pad, L, H, batch_block):
    """Batch tile: multiple of 16, divides B, fits ~48 MiB VMEM (v7x-safe),
    and leaves nb >= 2 grid blocks when the batch allows (megacore split)."""
    lr = max(L - 1, 1)
    # Weights are resident (double-buffered by the pipeline).
    weight_bytes = 2 * (H * G * 2 + lr * 2 * H * G * 2 + L * G * 4
                        + 2 * L * H * E_pad * 2 + E_pad * 4)
    # Per batch-row bytes: pg0 block (bf16, x2 buffers), out block (f32, x2),
    # feat scratch, live h/c state.
    per_row = 2 * (T * G * 2) + 2 * (E_pad * 4) + 2 * L * H * 4 + 4 * L * H * 4
    budget = 48 * 1024 * 1024
    vmem_cap = max(16, (budget - weight_bytes) // max(per_row, 1))
    cap = max(16, min(batch_block, vmem_cap))
    if B % 16 != 0 or B <= 16:
        return B, weight_bytes, per_row
    cands = [d for d in range(16, min(B, cap) + 1, 16) if B % d == 0]
    if not cands:
        return B, weight_bytes, per_row
    pref = [d for d in cands if B // d >= 2]
    tb = max(pref) if pref else max(cands)
    return tb, weight_bytes, per_row


def qst_encoder_forward(question, params, *, embed_size, batch_block=1024):
    """question: (B, T) int32 -> (B, embed_size) float32."""
    B, T = question.shape
    L = params["w_hh"].shape[0]
    H = params["w_hh"].shape[2]
    G = 4 * H
    E_pad = ((embed_size + 127) // 128) * 128   # lane-dense output slab

    # One-time gate-column permutation: PyTorch order [i, f, g, o] -> [i, f, o, g].
    perm = jnp.concatenate([jnp.arange(0, 2 * H),
                            jnp.arange(3 * H, 4 * H),
                            jnp.arange(2 * H, 3 * H)])

    w_ih0_t = params["w_ih0"][perm].T.astype(jnp.bfloat16)            # (E, 4H)
    w_hh_p = params["w_hh"][:, perm, :]                               # (L, 4H, H)
    w_hh0_t = w_hh_p[0].T.astype(jnp.bfloat16)                        # (H, 4H)
    if L > 1:
        # Fused per-layer weight: rows [W_ih_l.T ; W_hh_l.T] -> (2H, 4H).
        w_ih_rest_p = params["w_ih_rest"][:L - 1, perm, :]            # (L-1, 4H, H)
        w_cat = jnp.concatenate(
            [jnp.transpose(w_ih_rest_p, (0, 2, 1)),
             jnp.transpose(w_hh_p[1:], (0, 2, 1))],
            axis=1).astype(jnp.bfloat16)                              # (L-1, 2H, 4H)
    else:
        # Dummy (never read by the kernel) so BlockSpecs stay static.
        w_cat = jnp.zeros((1, 2 * H, G), jnp.bfloat16)
    b = (params["b_ih"] + params["b_hh"])[:, perm]                    # (L, 4H) f32
    b3 = b[:, None, :]                                                # (L, 1, 4H)

    fc_w_t = params["fc_w"].T.astype(jnp.bfloat16)                    # (2LH, embed)
    fc_w_t = jnp.pad(fc_w_t, ((0, 0), (0, E_pad - embed_size)))       # (2LH, E_pad)
    fc_b = jnp.pad(params["fc_b"], (0, E_pad - embed_size))[None, :]  # (1, E_pad)
    fc_b = fc_b.astype(jnp.float32)

    # Hoisted layer-0 input projection for ALL timesteps: embedding gather,
    # tanh, one big bf16 MXU matmul emitted time-major, layer-0 bias folded in,
    # stored bf16 (halves the kernel's dominant HBM read and VMEM block).
    # TODO(synk): the embedding gather stays in XLA (glue); a further step is
    # review item 7 (pass x and do the layer-0 projection in-kernel) to cut
    # HBM traffic from T*B*4H to T*B*E.
    x = jnp.tanh(params["emb"][question]).astype(jnp.bfloat16)        # (B, T, E)
    pg0 = (jnp.einsum("bte,eg->tbg", x, w_ih0_t,
                      preferred_element_type=jnp.float32)
           + b[0]).astype(jnp.bfloat16)                               # (T, B, 4H)

    # Batch tiling: one grid axis, parallel across TensorCores.
    tb, weight_bytes, per_row = _pick_batch_block(B, T, G, E_pad, L, H,
                                                  batch_block)
    assert B % tb == 0, "batch must be divisible by the batch block"
    nb = B // tb
    lr = w_cat.shape[0]
    vmem_limit = int(min(max(weight_bytes + tb * per_row + (8 << 20), 32 << 20),
                         96 << 20))

    cost = pl.CostEstimate(
        flops=2 * T * B * H * G * (2 * L - 1) + 2 * B * (2 * L * H) * E_pad,
        transcendentals=T * L * B * 5 * H + B * 2 * L * H,
        bytes_accessed=(T * B * G * 2 + H * G * 2 + lr * 2 * H * G * 2
                        + L * G * 4 + 2 * L * H * E_pad * 2
                        + E_pad * 4 + B * E_pad * 4),
    )

    out = pl.pallas_call(
        _qst_lstm_fc_kernel,
        out_shape=jax.ShapeDtypeStruct((B, E_pad), jnp.float32),
        grid=(nb,),
        in_specs=[
            pl.BlockSpec((T, tb, G), lambda i: (0, i, 0)),            # pre-gates (bf16)
            pl.BlockSpec((H, G), lambda i: (0, 0)),                   # W_hh layer 0
            pl.BlockSpec((lr, 2 * H, G), lambda i: (0, 0, 0)),        # fused W layers >= 1
            pl.BlockSpec((L, 1, G), lambda i: (0, 0, 0)),             # biases
            pl.BlockSpec((2 * L * H, E_pad), lambda i: (0, 0)),       # fc weight
            pl.BlockSpec((1, E_pad), lambda i: (0, 0)),               # fc bias
        ],
        out_specs=pl.BlockSpec((tb, E_pad), lambda i: (i, 0)),
        scratch_shapes=[pltpu.VMEM((tb, 2 * L * H), jnp.float32)],
        compiler_params=pltpu.CompilerParams(
            dimension_semantics=("parallel",),
            vmem_limit_bytes=vmem_limit),
        cost_estimate=cost,
    )(pg0, w_hh0_t, w_cat, b3, fc_w_t, fc_b)
    return out[:, :embed_size]


def init_params(key, vocab, word_embed, embed_size, num_layers, hidden):
    ks = jax.random.split(key, 9)
    s = 1.0 / jnp.sqrt(hidden)
    u = lambda k, shape, sc: jax.random.uniform(k, shape, jnp.float32, -sc, sc)
    return {
        "emb": jax.random.normal(ks[0], (vocab, word_embed), jnp.float32),
        "w_ih0": u(ks[1], (4 * hidden, word_embed), s),
        "w_ih_rest": u(ks[2], (max(num_layers - 1, 1), 4 * hidden, hidden), s),
        "w_hh": u(ks[3], (num_layers, 4 * hidden, hidden), s),
        "b_ih": u(ks[4], (num_layers, 4 * hidden), s),
        "b_hh": u(ks[5], (num_layers, 4 * hidden), s),
        "fc_w": u(ks[6], (embed_size, 2 * num_layers * hidden),
                  1.0 / jnp.sqrt(2 * num_layers * hidden)),
        "fc_b": u(ks[7], (embed_size,),
                  1.0 / jnp.sqrt(2 * num_layers * hidden)),
    }


def reference_forward(question, p):
    """Pure-JAX f32 reference matching the PyTorch forward semantics."""
    x = jnp.tanh(p["emb"][question])                 # (B, T, E)
    x = jnp.transpose(x, (1, 0, 2))                  # (T, B, E)
    L = p["w_hh"].shape[0]
    H = p["w_hh"].shape[2]
    B = question.shape[0]
    hs = [jnp.zeros((B, H), jnp.float32) for _ in range(L)]
    cs = [jnp.zeros((B, H), jnp.float32) for _ in range(L)]
    for t in range(x.shape[0]):
        inp = x[t]
        for l in range(L):
            w_ih = p["w_ih0"] if l == 0 else p["w_ih_rest"][l - 1]
            gates = (inp @ w_ih.T + hs[l] @ p["w_hh"][l].T
                     + p["b_ih"][l] + p["b_hh"][l])
            i = jax.nn.sigmoid(gates[:, :H])
            f = jax.nn.sigmoid(gates[:, H:2 * H])
            g = jnp.tanh(gates[:, 2 * H:3 * H])
            o = jax.nn.sigmoid(gates[:, 3 * H:])
            cs[l] = f * cs[l] + i * g
            hs[l] = o * jnp.tanh(cs[l])
            inp = hs[l]
    hidden = jnp.stack(hs)                           # (L, B, H)
    cell = jnp.stack(cs)                             # (L, B, H)
    feat = jnp.concatenate([hidden, cell], axis=2)   # (L, B, 2H)
    feat = jnp.transpose(feat, (1, 0, 2)).reshape(B, -1)
    feat = jnp.tanh(feat)
    return feat @ p["fc_w"].T + p["fc_b"]


if __name__ == "__main__":
    qst_vocab_size = 50
    word_embed_size = 16
    embed_size = 32
    num_layers = 2
    hidden_size = 32
    batch, seq = 2, 8

    key = jax.random.PRNGKey(0)
    kp, kq = jax.random.split(key)
    params = init_params(kp, qst_vocab_size, word_embed_size, embed_size,
                         num_layers, hidden_size)
    question = jax.random.randint(kq, (batch, seq), 0, qst_vocab_size,
                                  dtype=jnp.int32)

    out = jax.jit(
        lambda q, p: qst_encoder_forward(q, p, embed_size=embed_size)
    )(question, params)
    out = jax.block_until_ready(out)

    ref = reference_forward(question, params)
    assert out.shape == (batch, embed_size)
    # bf16 MXU operands + bf16 pre-gates -> loosened tolerance vs. f32 reference.
    assert jnp.allclose(out, ref, atol=8e-2, rtol=8e-2), (
        f"max abs err {jnp.max(jnp.abs(out - ref))}")
    print("KERNEL_OK")
</pallas_src>

<mosaic_0001>
module attributes {stable_mosaic.version = 11 : i64} {
  func.func @_qst_lstm_fc_kernel(%arg0: i32, %arg1: memref<8x2x128xbf16, #tpu.memory_space<vmem>>, %arg2: memref<32x128xbf16, #tpu.memory_space<vmem>>, %arg3: memref<1x64x128xbf16, #tpu.memory_space<vmem>>, %arg4: memref<2x1x128xf32, #tpu.memory_space<vmem>>, %arg5: memref<128x128xbf16, #tpu.memory_space<vmem>>, %arg6: memref<1x128xf32, #tpu.memory_space<vmem>>, %arg7: memref<2x128xf32, #tpu.memory_space<vmem>>, %arg8: memref<2x128xf32, #tpu.memory_space<vmem>>) attributes {dimension_semantics = [#tpu.dimension_semantics<parallel>], iteration_bounds = array<i64: 1>, scalar_prefetch = 0 : i64, scratch_operands = 1 : i64, tpu.core_type = #tpu.core_type<tc>, window_params = [{transform_indices = @transform_0, window_bounds = array<i64: 8, 2, 128>}, {pipeline_mode = #tpu.pipeline_mode<synchronous>, transform_indices = @transform_1, window_bounds = array<i64: 32, 128>}, {pipeline_mode = #tpu.pipeline_mode<synchronous>, transform_indices = @transform_2, window_bounds = array<i64: 1, 64, 128>}, {pipeline_mode = #tpu.pipeline_mode<synchronous>, transform_indices = @transform_3, window_bounds = array<i64: 2, 1, 128>}, {pipeline_mode = #tpu.pipeline_mode<synchronous>, transform_indices = @transform_4, window_bounds = array<i64: 128, 128>}, {pipeline_mode = #tpu.pipeline_mode<synchronous>, transform_indices = @transform_5, window_bounds = array<i64: 1, 128>}, {transform_indices = @transform_6, window_bounds = array<i64: 2, 128>}]} {
    %c0 = arith.constant 0 : index
    %c0_0 = arith.constant 0 : index
    %0 = vector.load %arg2[%c0, %c0_0] : memref<32x128xbf16, #tpu.memory_space<vmem>>, vector<32x128xbf16>
    %c0_1 = arith.constant 0 : index
    %c0_2 = arith.constant 0 : index
    %c0_3 = arith.constant 0 : index
    %1 = vector.load %arg3[%c0_1, %c0_2, %c0_3] : memref<1x64x128xbf16, #tpu.memory_space<vmem>>, vector<1x64x128xbf16>
    %2 = vector.shape_cast %1 : vector<1x64x128xbf16> to vector<64x128xbf16>
    %c1 = arith.constant 1 : index
    %c0_4 = arith.constant 0 : index
    %c0_5 = arith.constant 0 : index
    %3 = vector.load %arg4[%c1, %c0_4, %c0_5] : memref<2x1x128xf32, #tpu.memory_space<vmem>>, vector<1x1x128xf32>
    %4 = vector.shape_cast %3 : vector<1x1x128xf32> to vector<1x128xf32>
    %5 = vector.shape_cast %4 : vector<1x128xf32> to vector<1x128xf32>
    %6 = vector.broadcast %5 : vector<1x128xf32> to vector<2x128xf32>
    %cst = arith.constant 0.000000e+00 : f32
    %7 = vector.broadcast %cst : f32 to vector<2x32xf32>
    %cst_6 = arith.constant 0.000000e+00 : f32
    %8 = vector.broadcast %cst_6 : f32 to vector<2x32xf32>
    %c0_i32 = arith.constant 0 : i32
    %9 = arith.index_cast %c0_i32 : i32 to index
    %c0_7 = arith.constant 0 : index
    %c0_8 = arith.constant 0 : index
    %10 = vector.load %arg1[%9, %c0_7, %c0_8] : memref<8x2x128xbf16, #tpu.memory_space<vmem>>, vector<1x2x128xbf16>
    %11 = vector.shape_cast %10 : vector<1x2x128xbf16> to vector<2x128xbf16>
    %12 = arith.extf %11 : vector<2x128xbf16> to vector<2x128xf32>
    %13 = arith.truncf %7 : vector<2x32xf32> to vector<2x32xbf16>
    %cst_9 = arith.constant dense<0.000000e+00> : vector<2x128xf32>
    %14 = tpu.matmul %13, %0, %cst_9 {dimension_numbers = #tpu.dot_dimension_numbers<[1], [0], [0], [1], [0, 0, 1, 1], [], []>} : vector<2x32xbf16>, vector<32x128xbf16>, vector<2x128xf32> -> vector<2x128xf32>
    %15 = arith.addf %12, %14 : vector<2x128xf32>
    %16 = vector.extract_strided_slice %15 {offsets = [0, 0], sizes = [2, 96], strides = [1, 1]} : vector<2x128xf32> to vector<2x96xf32>
    %cst_10 = arith.constant 5.000000e-01 : f32
    %17 = vector.broadcast %cst_10 : f32 to vector<2x96xf32>
    %18 = arith.mulf %17, %16 : vector<2x96xf32>
    %19 = math.tanh %18 : vector<2x96xf32>
    %cst_11 = arith.constant 5.000000e-01 : f32
    %20 = vector.broadcast %cst_11 : f32 to vector<2x96xf32>
    %21 = arith.mulf %20, %19 : vector<2x96xf32>
    %cst_12 = arith.constant 5.000000e-01 : f32
    %22 = vector.broadcast %cst_12 : f32 to vector<2x96xf32>
    %23 = arith.addf %21, %22 : vector<2x96xf32>
    %24 = vector.extract_strided_slice %15 {offsets = [0, 96], sizes = [2, 32], strides = [1, 1]} : vector<2x128xf32> to vector<2x32xf32>
    %25 = math.tanh %24 : vector<2x32xf32>
    %26 = vector.extract_strided_slice %23 {offsets = [0, 0], sizes = [2, 32], strides = [1, 1]} : vector<2x96xf32> to vector<2x32xf32>
    %27 = vector.extract_strided_slice %23 {offsets = [0, 32], sizes = [2, 32], strides = [1, 1]} : vector<2x96xf32> to vector<2x32xf32>
    %28 = vector.extract_strided_slice %23 {offsets = [0, 64], sizes = [2, 32], strides = [1, 1]} : vector<2x96xf32> to vector<2x32xf32>
    %29 = arith.mulf %27, %7 : vector<2x32xf32>
    %30 = arith.mulf %26, %25 : vector<2x32xf32>
    %31 = arith.addf %29, %30 : vector<2x32xf32>
    %32 = math.tanh %31 : vector<2x32xf32>
    %33 = arith.mulf %28, %32 : vector<2x32xf32>
    %34 = tpu.concatenate %33, %8 in 1 : vector<2x32xf32>, vector<2x32xf32> -> vector<2x64xf32>
    %35 = arith.truncf %34 : vector<2x64xf32> to vector<2x64xbf16>
    %cst_13 = arith.constant dense<0.000000e+00> : vector<2x128xf32>
    %36 = tpu.matmul %35, %2, %cst_13 {dimension_numbers = #tpu.dot_dimension_numbers<[1], [0], [0], [1], [0, 0, 1, 1], [], []>} : vector<2x64xbf16>, vector<64x128xbf16>, vector<2x128xf32> -> vector<2x128xf32>
    %37 = arith.addf %36, %6 : vector<2x128xf32>
    %38 = vector.extract_strided_slice %37 {offsets = [0, 0], sizes = [2, 96], strides = [1, 1]} : vector<2x128xf32> to vector<2x96xf32>
    %cst_14 = arith.constant 5.000000e-01 : f32
    %39 = vector.broadcast %cst_14 : f32 to vector<2x96xf32>
    %40 = arith.mulf %39, %38 : vector<2x96xf32>
    %41 = math.tanh %40 : vector<2x96xf32>
    %cst_15 = arith.constant 5.000000e-01 : f32
    %42 = vector.broadcast %cst_15 : f32 to vector<2x96xf32>
    %43 = arith.mulf %42, %41 : vector<2x96xf32>
    %cst_16 = arith.constant 5.000000e-01 : f32
    %44 = vector.broadcast %cst_16 : f32 to vector<2x96xf32>
    %45 = arith.addf %43, %44 : vector<2x96xf32>
    %46 = vector.extract_strided_slice %37 {offsets = [0, 96], sizes = [2, 32], strides = [1, 1]} : vector<2x128xf32> to vector<2x32xf32>
    %47 = math.tanh %46 : vector<2x32xf32>
    %48 = vector.extract_strided_slice %45 {offsets = [0, 0], sizes = [2, 32], strides = [1, 1]} : vector<2x96xf32> to vector<2x32xf32>
    %49 = vector.extract_strided_slice %45 {offsets = [0, 32], sizes = [2, 32], strides = [1, 1]} : vector<2x96xf32> to vector<2x32xf32>
    %50 = vector.extract_strided_slice %45 {offsets = [0, 64], sizes = [2, 32], strides = [1, 1]} : vector<2x96xf32> to vector<2x32xf32>
    %51 = arith.mulf %49, %8 : vector<2x32xf32>
    %52 = arith.mulf %48, %47 : vector<2x32xf32>
    %53 = arith.addf %51, %52 : vector<2x32xf32>
    %54 = math.tanh %53 : vector<2x32xf32>
    %55 = arith.mulf %50, %54 : vector<2x32xf32>
    %c1_i32 = arith.constant 1 : i32
    %56 = arith.index_cast %c1_i32 : i32 to index
    %c0_17 = arith.constant 0 : index
    %c0_18 = arith.constant 0 : index
    %57 = vector.load %arg1[%56, %c0_17, %c0_18] : memref<8x2x128xbf16, #tpu.memory_space<vmem>>, vector<1x2x128xbf16>
    %58 = vector.shape_cast %57 : vector<1x2x128xbf16> to vector<2x128xbf16>
    %59 = arith.extf %58 : vector<2x128xbf16> to vector<2x128xf32>
    %60 = arith.truncf %33 : vector<2x32xf32> to vector<2x32xbf16>
    %cst_19 = arith.constant dense<0.000000e+00> : vector<2x128xf32>
    %61 = tpu.matmul %60, %0, %cst_19 {dimension_numbers = #tpu.dot_dimension_numbers<[1], [0], [0], [1], [0, 0, 1, 1], [], []>} : vector<2x32xbf16>, vector<32x128xbf16>, vector<2x128xf32> -> vector<2x128xf32>
    %62 = arith.addf %59, %61 : vector<2x128xf32>
    %63 = vector.extract_strided_slice %62 {offsets = [0, 0], sizes = [2, 96], strides = [1, 1]} : vector<2x128xf32> to vector<2x96xf32>
    %cst_20 = arith.constant 5.000000e-01 : f32
    %64 = vector.broadcast %cst_20 : f32 to vector<2x96xf32>
    %65 = arith.mulf %64, %63 : vector<2x96xf32>
    %66 = math.tanh %65 : vector<2x96xf32>
    %cst_21 = arith.constant 5.000000e-01 : f32
    %67 = vector.broadcast %cst_21 : f32 to vector<2x96xf32>
    %68 = arith.mulf %67, %66 : vector<2x96xf32>
    %cst_22 = arith.constant 5.000000e-01 : f32
    %69 = vector.broadcast %cst_22 : f32 to vector<2x96xf32>
    %70 = arith.addf %68, %69 : vector<2x96xf32>
    %71 = vector.extract_strided_slice %62 {offsets = [0, 96], sizes = [2, 32], strides = [1, 1]} : vector<2x128xf32> to vector<2x32xf32>
    %72 = math.tanh %71 : vector<2x32xf32>
    %73 = vector.extract_strided_slice %70 {offsets = [0, 0], sizes = [2, 32], strides = [1, 1]} : vector<2x96xf32> to vector<2x32xf32>
    %74 = vector.extract_strided_slice %70 {offsets = [0, 32], sizes = [2, 32], strides = [1, 1]} : vector<2x96xf32> to vector<2x32xf32>
    %75 = vector.extract_strided_slice %70 {offsets = [0, 64], sizes = [2, 32], strides = [1, 1]} : vector<2x96xf32> to vector<2x32xf32>
    %76 = arith.mulf %74, %31 : vector<2x32xf32>
    %77 = arith.mulf %73, %72 : vector<2x32xf32>
    %78 = arith.addf %76, %77 : vector<2x32xf32>
    %79 = math.tanh %78 : vector<2x32xf32>
    %80 = arith.mulf %75, %79 : vector<2x32xf32>
    %81 = tpu.concatenate %80, %55 in 1 : vector<2x32xf32>, vector<2x32xf32> -> vector<2x64xf32>
    %82 = arith.truncf %81 : vector<2x64xf32> to vector<2x64xbf16>
    %cst_23 = arith.constant dense<0.000000e+00> : vector<2x128xf32>
    %83 = tpu.matmul %82, %2, %cst_23 {dimension_numbers = #tpu.dot_dimension_numbers<[1], [0], [0], [1], [0, 0, 1, 1], [], []>} : vector<2x64xbf16>, vector<64x128xbf16>, vector<2x128xf32> -> vector<2x128xf32>
    %84 = arith.addf %83, %6 : vector<2x128xf32>
    %85 = vector.extract_strided_slice %84 {offsets = [0, 0], sizes = [2, 96], strides = [1, 1]} : vector<2x128xf32> to vector<2x96xf32>
    %cst_24 = arith.constant 5.000000e-01 : f32
    %86 = vector.broadcast %cst_24 : f32 to vector<2x96xf32>
    %87 = arith.mulf %86, %85 : vector<2x96xf32>
    %88 = math.tanh %87 : vector<2x96xf32>
    %cst_25 = arith.constant 5.000000e-01 : f32
    %89 = vector.broadcast %cst_25 : f32 to vector<2x96xf32>
    %90 = arith.mulf %89, %88 : vector<2x96xf32>
    %cst_26 = arith.constant 5.000000e-01 : f32
    %91 = vector.broadcast %cst_26 : f32 to vector<2x96xf32>
    %92 = arith.addf %90, %91 : vector<2x96xf32>
    %93 = vector.extract_strided_slice %84 {offsets = [0, 96], sizes = [2, 32], strides = [1, 1]} : vector<2x128xf32> to vector<2x32xf32>
    %94 = math.tanh %93 : vector<2x32xf32>
    %95 = vector.extract_strided_slice %92 {offsets = [0, 0], sizes = [2, 32], strides = [1, 1]} : vector<2x96xf32> to vector<2x32xf32>
    %96 = vector.extract_strided_slice %92 {offsets = [0, 32], sizes = [2, 32], strides = [1, 1]} : vector<2x96xf32> to vector<2x32xf32>
    %97 = vector.extract_strided_slice %92 {offsets = [0, 64], sizes = [2, 32], strides = [1, 1]} : vector<2x96xf32> to vector<2x32xf32>
    %98 = arith.mulf %96, %53 : vector<2x32xf32>
    %99 = arith.mulf %95, %94 : vector<2x32xf32>
    %100 = arith.addf %98, %99 : vector<2x32xf32>
    %101 = math.tanh %100 : vector<2x32xf32>
    %102 = arith.mulf %97, %101 : vector<2x32xf32>
    %c2_i32 = arith.constant 2 : i32
    %103 = arith.index_cast %c2_i32 : i32 to index
    %c0_27 = arith.constant 0 : index
    %c0_28 = arith.constant 0 : index
    %104 = vector.load %arg1[%103, %c0_27, %c0_28] : memref<8x2x128xbf16, #tpu.memory_space<vmem>>, vector<1x2x128xbf16>
    %105 = vector.shape_cast %104 : vector<1x2x128xbf16> to vector<2x128xbf16>
    %106 = arith.extf %105 : vector<2x128xbf16> to vector<2x128xf32>
    %107 = arith.truncf %80 : vector<2x32xf32> to vector<2x32xbf16>
    %cst_29 = arith.constant dense<0.000000e+00> : vector<2x128xf32>
    %108 = tpu.matmul %107, %0, %cst_29 {dimension_numbers = #tpu.dot_dimension_numbers<[1], [0], [0], [1], [0, 0, 1, 1], [], []>} : vector<2x32xbf16>, vector<32x128xbf16>, vector<2x128xf32> -> vector<2x128xf32>
    %109 = arith.addf %106, %108 : vector<2x128xf32>
    %110 = vector.extract_strided_slice %109 {offsets = [0, 0], sizes = [2, 96], strides = [1, 1]} : vector<2x128xf32> to vector<2x96xf32>
    %cst_30 = arith.constant 5.000000e-01 : f32
    %111 = vector.broadcast %cst_30 : f32 to vector<2x96xf32>
    %112 = arith.mulf %111, %110 : vector<2x96xf32>
    %113 = math.tanh %112 : vector<2x96xf32>
    %cst_31 = arith.constant 5.000000e-01 : f32
    %114 = vector.broadcast %cst_31 : f32 to vector<2x96xf32>
    %115 = arith.mulf %114, %113 : vector<2x96xf32>
    %cst_32 = arith.constant 5.000000e-01 : f32
    %116 = vector.broadcast %cst_32 : f32 to vector<2x96xf32>
    %117 = arith.addf %115, %116 : vector<2x96xf32>
    %118 = vector.extract_strided_slice %109 {offsets = [0, 96], sizes = [2, 32], strides = [1, 1]} : vector<2x128xf32> to vector<2x32xf32>
    %119 = math.tanh %118 : vector<2x32xf32>
    %120 = vector.extract_strided_slice %117 {offsets = [0, 0], sizes = [2, 32], strides = [1, 1]} : vector<2x96xf32> to vector<2x32xf32>
    %121 = vector.extract_strided_slice %117 {offsets = [0, 32], sizes = [2, 32], strides = [1, 1]} : vector<2x96xf32> to vector<2x32xf32>
    %122 = vector.extract_strided_slice %117 {offsets = [0, 64], sizes = [2, 32], strides = [1, 1]} : vector<2x96xf32> to vector<2x32xf32>
    %123 = arith.mulf %121, %78 : vector<2x32xf32>
    %124 = arith.mulf %120, %119 : vector<2x32xf32>
    %125 = arith.addf %123, %124 : vector<2x32xf32>
    %126 = math.tanh %125 : vector<2x32xf32>
    %127 = arith.mulf %122, %126 : vector<2x32xf32>
    %128 = tpu.concatenate %127, %102 in 1 : vector<2x32xf32>, vector<2x32xf32> -> vector<2x64xf32>
    %129 = arith.truncf %128 : vector<2x64xf32> to vector<2x64xbf16>
    %cst_33 = arith.constant dense<0.000000e+00> : vector<2x128xf32>
    %130 = tpu.matmul %129, %2, %cst_33 {dimension_numbers = #tpu.dot_dimension_numbers<[1], [0], [0], [1], [0, 0, 1, 1], [], []>} : vector<2x64xbf16>, vector<64x128xbf16>, vector<2x128xf32> -> vector<2x128xf32>
    %131 = arith.addf %130, %6 : vector<2x128xf32>
    %132 = vector.extract_strided_slice %131 {offsets = [0, 0], sizes = [2, 96], strides = [1, 1]} : vector<2x128xf32> to vector<2x96xf32>
    %cst_34 = arith.constant 5.000000e-01 : f32
    %133 = vector.broadcast %cst_34 : f32 to vector<2x96xf32>
    %134 = arith.mulf %133, %132 : vector<2x96xf32>
    %135 = math.tanh %134 : vector<2x96xf32>
    %cst_35 = arith.constant 5.000000e-01 : f32
    %136 = vector.broadcast %cst_35 : f32 to vector<2x96xf32>
    %137 = arith.mulf %136, %135 : vector<2x96xf32>
    %cst_36 = arith.constant 5.000000e-01 : f32
    %138 = vector.broadcast %cst_36 : f32 to vector<2x96xf32>
    %139 = arith.addf %137, %138 : vector<2x96xf32>
    %140 = vector.extract_strided_slice %131 {offsets = [0, 96], sizes = [2, 32], strides = [1, 1]} : vector<2x128xf32> to vector<2x32xf32>
    %141 = math.tanh %140 : vector<2x32xf32>
    %142 = vector.extract_strided_slice %139 {offsets = [0, 0], sizes = [2, 32], strides = [1, 1]} : vector<2x96xf32> to vector<2x32xf32>
    %143 = vector.extract_strided_slice %139 {offsets = [0, 32], sizes = [2, 32], strides = [1, 1]} : vector<2x96xf32> to vector<2x32xf32>
    %144 = vector.extract_strided_slice %139 {offsets = [0, 64], sizes = [2, 32], strides = [1, 1]} : vector<2x96xf32> to vector<2x32xf32>
    %145 = arith.mulf %143, %100 : vector<2x32xf32>
    %146 = arith.mulf %142, %141 : vector<2x32xf32>
    %147 = arith.addf %145, %146 : vector<2x32xf32>
    %148 = math.tanh %147 : vector<2x32xf32>
    %149 = arith.mulf %144, %148 : vector<2x32xf32>
    %c3_i32 = arith.constant 3 : i32
    %150 = arith.index_cast %c3_i32 : i32 to index
    %c0_37 = arith.constant 0 : index
    %c0_38 = arith.constant 0 : index
    %151 = vector.load %arg1[%150, %c0_37, %c0_38] : memref<8x2x128xbf16, #tpu.memory_space<vmem>>, vector<1x2x128xbf16>
    %152 = vector.shape_cast %151 : vector<1x2x128xbf16> to vector<2x128xbf16>
    %153 = arith.extf %152 : vector<2x128xbf16> to vector<2x128xf32>
    %154 = arith.truncf %127 : vector<2x32xf32> to vector<2x32xbf16>
    %cst_39 = arith.constant dense<0.000000e+00> : vector<2x128xf32>
    %155 = tpu.matmul %154, %0, %cst_39 {dimension_numbers = #tpu.dot_dimension_numbers<[1], [0], [0], [1], [0, 0, 1, 1], [], []>} : vector<2x32xbf16>, vector<32x128xbf16>, vector<2x128xf32> -> vector<2x128xf32>
    %156 = arith.addf %153, %155 : vector<2x128xf32>
    %157 = vector.extract_strided_slice %156 {offsets = [0, 0], sizes = [2, 96], strides = [1, 1]} : vector<2x128xf32> to vector<2x96xf32>
    %cst_40 = arith.constant 5.000000e-01 : f32
    %158 = vector.broadcast %cst_40 : f32 to vector<2x96xf32>
    %159 = arith.mulf %158, %157 : vector<2x96xf32>
    %160 = math.tanh %159 : vector<2x96xf32>
    %cst_41 = arith.constant 5.000000e-01 : f32
    %161 = vector.broadcast %cst_41 : f32 to vector<2x96xf32>
    %162 = arith.mulf %161, %160 : vector<2x96xf32>
    %cst_42 = arith.constant 5.000000e-01 : f32
    %163 = vector.broadcast %cst_42 : f32 to vector<2x96xf32>
    %164 = arith.addf %162, %163 : vector<2x96xf32>
    %165 = vector.extract_strided_slice %156 {offsets = [0, 96], sizes = [2, 32], strides = [1, 1]} : vector<2x128xf32> to vector<2x32xf32>
    %166 = math.tanh %165 : vector<2x32xf32>
    %167 = vector.extract_strided_slice %164 {offsets = [0, 0], sizes = [2, 32], strides = [1, 1]} : vector<2x96xf32> to vector<2x32xf32>
    %168 = vector.extract_strided_slice %164 {offsets = [0, 32], sizes = [2, 32], strides = [1, 1]} : vector<2x96xf32> to vector<2x32xf32>
    %169 = vector.extract_strided_slice %164 {offsets = [0, 64], sizes = [2, 32], strides = [1, 1]} : vector<2x96xf32> to vector<2x32xf32>
    %170 = arith.mulf %168, %125 : vector<2x32xf32>
    %171 = arith.mulf %167, %166 : vector<2x32xf32>
    %172 = arith.addf %170, %171 : vector<2x32xf32>
    %173 = math.tanh %172 : vector<2x32xf32>
    %174 = arith.mulf %169, %173 : vector<2x32xf32>
    %175 = tpu.concatenate %174, %149 in 1 : vector<2x32xf32>, vector<2x32xf32> -> vector<2x64xf32>
    %176 = arith.truncf %175 : vector<2x64xf32> to vector<2x64xbf16>
    %cst_43 = arith.constant dense<0.000000e+00> : vector<2x128xf32>
    %177 = tpu.matmul %176, %2, %cst_43 {dimension_numbers = #tpu.dot_dimension_numbers<[1], [0], [0], [1], [0, 0, 1, 1], [], []>} : vector<2x64xbf16>, vector<64x128xbf16>, vector<2x128xf32> -> vector<2x128xf32>
    %178 = arith.addf %177, %6 : vector<2x128xf32>
    %179 = vector.extract_strided_slice %178 {offsets = [0, 0], sizes = [2, 96], strides = [1, 1]} : vector<2x128xf32> to vector<2x96xf32>
    %cst_44 = arith.constant 5.000000e-01 : f32
    %180 = vector.broadcast %cst_44 : f32 to vector<2x96xf32>
    %181 = arith.mulf %180, %179 : vector<2x96xf32>
    %182 = math.tanh %181 : vector<2x96xf32>
    %cst_45 = arith.constant 5.000000e-01 : f32
    %183 = vector.broadcast %cst_45 : f32 to vector<2x96xf32>
    %184 = arith.mulf %183, %182 : vector<2x96xf32>
    %cst_46 = arith.constant 5.000000e-01 : f32
    %185 = vector.broadcast %cst_46 : f32 to vector<2x96xf32>
    %186 = arith.addf %184, %185 : vector<2x96xf32>
    %187 = vector.extract_strided_slice %178 {offsets = [0, 96], sizes = [2, 32], strides = [1, 1]} : vector<2x128xf32> to vector<2x32xf32>
    %188 = math.tanh %187 : vector<2x32xf32>
    %189 = vector.extract_strided_slice %186 {offsets = [0, 0], sizes = [2, 32], strides = [1, 1]} : vector<2x96xf32> to vector<2x32xf32>
    %190 = vector.extract_strided_slice %186 {offsets = [0, 32], sizes = [2, 32], strides = [1, 1]} : vector<2x96xf32> to vector<2x32xf32>
    %191 = vector.extract_strided_slice %186 {offsets = [0, 64], sizes = [2, 32], strides = [1, 1]} : vector<2x96xf32> to vector<2x32xf32>
    %192 = arith.mulf %190, %147 : vector<2x32xf32>
    %193 = arith.mulf %189, %188 : vector<2x32xf32>
    %194 = arith.addf %192, %193 : vector<2x32xf32>
    %195 = math.tanh %194 : vector<2x32xf32>
    %196 = arith.mulf %191, %195 : vector<2x32xf32>
    %c4_i32 = arith.constant 4 : i32
    %197 = arith.index_cast %c4_i32 : i32 to index
    %c0_47 = arith.constant 0 : index
    %c0_48 = arith.constant 0 : index
    %198 = vector.load %arg1[%197, %c0_47, %c0_48] : memref<8x2x128xbf16, #tpu.memory_space<vmem>>, vector<1x2x128xbf16>
    %199 = vector.shape_cast %198 : vector<1x2x128xbf16> to vector<2x128xbf16>
    %200 = arith.extf %199 : vector<2x128xbf16> to vector<2x128xf32>
    %201 = arith.truncf %174 : vector<2x32xf32> to vector<2x32xbf16>
    %cst_49 = arith.constant dense<0.000000e+00> : vector<2x128xf32>
    %202 = tpu.matmul %201, %0, %cst_49 {dimension_numbers = #tpu.dot_dimension_numbers<[1], [0], [0], [1], [0, 0, 1, 1], [], []>} : vector<2x32xbf16>, vector<32x128xbf16>, vector<2x128xf32> -> vector<2x128xf32>
    %203 = arith.addf %200, %202 : vector<2x128xf32>
    %204 = vector.extract_strided_slice %203 {offsets = [0, 0], sizes = [2, 96], strides = [1, 1]} : vector<2x128xf32> to vector<2x96xf32>
    %cst_50 = arith.constant 5.000000e-01 : f32
    %205 = vector.broadcast %cst_50 : f32 to vector<2x96xf32>
    %206 = arith.mulf %205, %204 : vector<2x96xf32>
    %207 = math.tanh %206 : vector<2x96xf32>
    %cst_51 = arith.constant 5.000000e-01 : f32
    %208 = vector.broadcast %cst_51 : f32 to vector<2x96xf32>
    %209 = arith.mulf %208, %207 : vector<2x96xf32>
    %cst_52 = arith.constant 5.000000e-01 : f32
    %210 = vector.broadcast %cst_52 : f32 to vector<2x96xf32>
    %211 = arith.addf %209, %210 : vector<2x96xf32>
    %212 = vector.extract_strided_slice %203 {offsets = [0, 96], sizes = [2, 32], strides = [1, 1]} : vector<2x128xf32> to vector<2x32xf32>
    %213 = math.tanh %212 : vector<2x32xf32>
    %214 = vector.extract_strided_slice %211 {offsets = [0, 0], sizes = [2, 32], strides = [1, 1]} : vector<2x96xf32> to vector<2x32xf32>
    %215 = vector.extract_strided_slice %211 {offsets = [0, 32], sizes = [2, 32], strides = [1, 1]} : vector<2x96xf32> to vector<2x32xf32>
    %216 = vector.extract_strided_slice %211 {offsets = [0, 64], sizes = [2, 32], strides = [1, 1]} : vector<2x96xf32> to vector<2x32xf32>
    %217 = arith.mulf %215, %172 : vector<2x32xf32>
    %218 = arith.mulf %214, %213 : vector<2x32xf32>
    %219 = arith.addf %217, %218 : vector<2x32xf32>
    %220 = math.tanh %219 : vector<2x32xf32>
    %221 = arith.mulf %216, %220 : vector<2x32xf32>
    %222 = tpu.concatenate %221, %196 in 1 : vector<2x32xf32>, vector<2x32xf32> -> vector<2x64xf32>
    %223 = arith.truncf %222 : vector<2x64xf32> to vector<2x64xbf16>
    %cst_53 = arith.constant dense<0.000000e+00> : vector<2x128xf32>
    %224 = tpu.matmul %223, %2, %cst_53 {dimension_numbers = #tpu.dot_dimension_numbers<[1], [0], [0], [1], [0, 0, 1, 1], [], []>} : vector<2x64xbf16>, vector<64x128xbf16>, vector<2x128xf32> -> vector<2x128xf32>
    %225 = arith.addf %224, %6 : vector<2x128xf32>
    %226 = vector.extract_strided_slice %225 {offsets = [0, 0], sizes = [2, 96], strides = [1, 1]} : vector<2x128xf32> to vector<2x96xf32>
    %cst_54 = arith.constant 5.000000e-01 : f32
    %227 = vector.broadcast %cst_54 : f32 to vector<2x96xf32>
    %228 = arith.mulf %227, %226 : vector<2x96xf32>
    %229 = math.tanh %228 : vector<2x96xf32>
    %cst_55 = arith.constant 5.000000e-01 : f32
    %230 = vector.broadcast %cst_55 : f32 to vector<2x96xf32>
    %231 = arith.mulf %230, %229 : vector<2x96xf32>
    %cst_56 = arith.constant 5.000000e-01 : f32
    %232 = vector.broadcast %cst_56 : f32 to vector<2x96xf32>
    %233 = arith.addf %231, %232 : vector<2x96xf32>
    %234 = vector.extract_strided_slice %225 {offsets = [0, 96], sizes = [2, 32], strides = [1, 1]} : vector<2x128xf32> to vector<2x32xf32>
    %235 = math.tanh %234 : vector<2x32xf32>
    %236 = vector.extract_strided_slice %233 {offsets = [0, 0], sizes = [2, 32], strides = [1, 1]} : vector<2x96xf32> to vector<2x32xf32>
    %237 = vector.extract_strided_slice %233 {offsets = [0, 32], sizes = [2, 32], strides = [1, 1]} : vector<2x96xf32> to vector<2x32xf32>
    %238 = vector.extract_strided_slice %233 {offsets = [0, 64], sizes = [2, 32], strides = [1, 1]} : vector<2x96xf32> to vector<2x32xf32>
    %239 = arith.mulf %237, %194 : vector<2x32xf32>
    %240 = arith.mulf %236, %235 : vector<2x32xf32>
    %241 = arith.addf %239, %240 : vector<2x32xf32>
    %242 = math.tanh %241 : vector<2x32xf32>
    %243 = arith.mulf %238, %242 : vector<2x32xf32>
    %c5_i32 = arith.constant 5 : i32
    %244 = arith.index_cast %c5_i32 : i32 to index
    %c0_57 = arith.constant 0 : index
    %c0_58 = arith.constant 0 : index
    %245 = vector.load %arg1[%244, %c0_57, %c0_58] : memref<8x2x128xbf16, #tpu.memory_space<vmem>>, vector<1x2x128xbf16>
    %246 = vector.shape_cast %245 : vector<1x2x128xbf16> to vector<2x128xbf16>
    %247 = arith.extf %246 : vector<2x128xbf16> to vector<2x128xf32>
    %248 = arith.truncf %221 : vector<2x32xf32> to vector<2x32xbf16>
    %cst_59 = arith.constant dense<0.000000e+00> : vector<2x128xf32>
    %249 = tpu.matmul %248, %0, %cst_59 {dimension_numbers = #tpu.dot_dimension_numbers<[1], [0], [0], [1], [0, 0, 1, 1], [], []>} : vector<2x32xbf16>, vector<32x128xbf16>, vector<2x128xf32> -> vector<2x128xf32>
    %250 = arith.addf %247, %249 : vector<2x128xf32>
    %251 = vector.extract_strided_slice %250 {offsets = [0, 0], sizes = [2, 96], strides = [1, 1]} : vector<2x128xf32> to vector<2x96xf32>
    %cst_60 = arith.constant 5.000000e-01 : f32
    %252 = vector.broadcast %cst_60 : f32 to vector<2x96xf32>
    %253 = arith.mulf %252, %251 : vector<2x96xf32>
    %254 = math.tanh %253 : vector<2x96xf32>
    %cst_61 = arith.constant 5.000000e-01 : f32
    %255 = vector.broadcast %cst_61 : f32 to vector<2x96xf32>
    %256 = arith.mulf %255, %254 : vector<2x96xf32>
    %cst_62 = arith.constant 5.000000e-01 : f32
    %257 = vector.broadcast %cst_62 : f32 to vector<2x96xf32>
    %258 = arith.addf %256, %257 : vector<2x96xf32>
    %259 = vector.extract_strided_slice %250 {offsets = [0, 96], sizes = [2, 32], strides = [1, 1]} : vector<2x128xf32> to vector<2x32xf32>
    %260 = math.tanh %259 : vector<2x32xf32>
    %261 = vector.extract_strided_slice %258 {offsets = [0, 0], sizes = [2, 32], strides = [1, 1]} : vector<2x96xf32> to vector<2x32xf32>
    %262 = vector.extract_strided_slice %258 {offsets = [0, 32], sizes = [2, 32], strides = [1, 1]} : vector<2x96xf32> to vector<2x32xf32>
    %263 = vector.extract_strided_slice %258 {offsets = [0, 64], sizes = [2, 32], strides = [1, 1]} : vector<2x96xf32> to vector<2x32xf32>
    %264 = arith.mulf %262, %219 : vector<2x32xf32>
    %265 = arith.mulf %261, %260 : vector<2x32xf32>
    %266 = arith.addf %264, %265 : vector<2x32xf32>
    %267 = math.tanh %266 : vector<2x32xf32>
    %268 = arith.mulf %263, %267 : vector<2x32xf32>
    %269 = tpu.concatenate %268, %243 in 1 : vector<2x32xf32>, vector<2x32xf32> -> vector<2x64xf32>
    %270 = arith.truncf %269 : vector<2x64xf32> to vector<2x64xbf16>
    %cst_63 = arith.constant dense<0.000000e+00> : vector<2x128xf32>
    %271 = tpu.matmul %270, %2, %cst_63 {dimension_numbers = #tpu.dot_dimension_numbers<[1], [0], [0], [1], [0, 0, 1, 1], [], []>} : vector<2x64xbf16>, vector<64x128xbf16>, vector<2x128xf32> -> vector<2x128xf32>
    %272 = arith.addf %271, %6 : vector<2x128xf32>
    %273 = vector.extract_strided_slice %272 {offsets = [0, 0], sizes = [2, 96], strides = [1, 1]} : vector<2x128xf32> to vector<2x96xf32>
    %cst_64 = arith.constant 5.000000e-01 : f32
    %274 = vector.broadcast %cst_64 : f32 to vector<2x96xf32>
    %275 = arith.mulf %274, %273 : vector<2x96xf32>
    %276 = math.tanh %275 : vector<2x96xf32>
    %cst_65 = arith.constant 5.000000e-01 : f32
    %277 = vector.broadcast %cst_65 : f32 to vector<2x96xf32>
    %278 = arith.mulf %277, %276 : vector<2x96xf32>
    %cst_66 = arith.constant 5.000000e-01 : f32
    %279 = vector.broadcast %cst_66 : f32 to vector<2x96xf32>
    %280 = arith.addf %278, %279 : vector<2x96xf32>
    %281 = vector.extract_strided_slice %272 {offsets = [0, 96], sizes = [2, 32], strides = [1, 1]} : vector<2x128xf32> to vector<2x32xf32>
    %282 = math.tanh %281 : vector<2x32xf32>
    %283 = vector.extract_strided_slice %280 {offsets = [0, 0], sizes = [2, 32], strides = [1, 1]} : vector<2x96xf32> to vector<2x32xf32>
    %284 = vector.extract_strided_slice %280 {offsets = [0, 32], sizes = [2, 32], strides = [1, 1]} : vector<2x96xf32> to vector<2x32xf32>
    %285 = vector.extract_strided_slice %280 {offsets = [0, 64], sizes = [2, 32], strides = [1, 1]} : vector<2x96xf32> to vector<2x32xf32>
    %286 = arith.mulf %284, %241 : vector<2x32xf32>
    %287 = arith.mulf %283, %282 : vector<2x32xf32>
    %288 = arith.addf %286, %287 : vector<2x32xf32>
    %289 = math.tanh %288 : vector<2x32xf32>
    %290 = arith.mulf %285, %289 : vector<2x32xf32>
    %c6_i32 = arith.constant 6 : i32
    %291 = arith.index_cast %c6_i32 : i32 to index
    %c0_67 = arith.constant 0 : index
    %c0_68 = arith.constant 0 : index
    %292 = vector.load %arg1[%291, %c0_67, %c0_68] : memref<8x2x128xbf16, #tpu.memory_space<vmem>>, vector<1x2x128xbf16>
    %293 = vector.shape_cast %292 : vector<1x2x128xbf16> to vector<2x128xbf16>
    %294 = arith.extf %293 : vector<2x128xbf16> to vector<2x128xf32>
    %295 = arith.truncf %268 : vector<2x32xf32> to vector<2x32xbf16>
    %cst_69 = arith.constant dense<0.000000e+00> : vector<2x128xf32>
    %296 = tpu.matmul %295, %0, %cst_69 {dimension_numbers = #tpu.dot_dimension_numbers<[1], [0], [0], [1], [0, 0, 1, 1], [], []>} : vector<2x32xbf16>, vector<32x128xbf16>, vector<2x128xf32> -> vector<2x128xf32>
    %297 = arith.addf %294, %296 : vector<2x128xf32>
    %298 = vector.extract_strided_slice %297 {offsets = [0, 0], sizes = [2, 96], strides = [1, 1]} : vector<2x128xf32> to vector<2x96xf32>
    %cst_70 = arith.constant 5.000000e-01 : f32
    %299 = vector.broadcast %cst_70 : f32 to vector<2x96xf32>
    %300 = arith.mulf %299, %298 : vector<2x96xf32>
    %301 = math.tanh %300 : vector<2x96xf32>
    %cst_71 = arith.constant 5.000000e-01 : f32
    %302 = vector.broadcast %cst_71 : f32 to vector<2x96xf32>
    %303 = arith.mulf %302, %301 : vector<2x96xf32>
    %cst_72 = arith.constant 5.000000e-01 : f32
    %304 = vector.broadcast %cst_72 : f32 to vector<2x96xf32>
    %305 = arith.addf %303, %304 : vector<2x96xf32>
    %306 = vector.extract_strided_slice %297 {offsets = [0, 96], sizes = [2, 32], strides = [1, 1]} : vector<2x128xf32> to vector<2x32xf32>
    %307 = math.tanh %306 : vector<2x32xf32>
    %308 = vector.extract_strided_slice %305 {offsets = [0, 0], sizes = [2, 32], strides = [1, 1]} : vector<2x96xf32> to vector<2x32xf32>
    %309 = vector.extract_strided_slice %305 {offsets = [0, 32], sizes = [2, 32], strides = [1, 1]} : vector<2x96xf32> to vector<2x32xf32>
    %310 = vector.extract_strided_slice %305 {offsets = [0, 64], sizes = [2, 32], strides = [1, 1]} : vector<2x96xf32> to vector<2x32xf32>
    %311 = arith.mulf %309, %266 : vector<2x32xf32>
    %312 = arith.mulf %308, %307 : vector<2x32xf32>
    %313 = arith.addf %311, %312 : vector<2x32xf32>
    %314 = math.tanh %313 : vector<2x32xf32>
    %315 = arith.mulf %310, %314 : vector<2x32xf32>
    %316 = tpu.concatenate %315, %290 in 1 : vector<2x32xf32>, vector<2x32xf32> -> vector<2x64xf32>
    %317 = arith.truncf %316 : vector<2x64xf32> to vector<2x64xbf16>
    %cst_73 = arith.constant dense<0.000000e+00> : vector<2x128xf32>
    %318 = tpu.matmul %317, %2, %cst_73 {dimension_numbers = #tpu.dot_dimension_numbers<[1], [0], [0], [1], [0, 0, 1, 1], [], []>} : vector<2x64xbf16>, vector<64x128xbf16>, vector<2x128xf32> -> vector<2x128xf32>
    %319 = arith.addf %318, %6 : vector<2x128xf32>
    %320 = vector.extract_strided_slice %319 {offsets = [0, 0], sizes = [2, 96], strides = [1, 1]} : vector<2x128xf32> to vector<2x96xf32>
    %cst_74 = arith.constant 5.000000e-01 : f32
    %321 = vector.broadcast %cst_74 : f32 to vector<2x96xf32>
    %322 = arith.mulf %321, %320 : vector<2x96xf32>
    %323 = math.tanh %322 : vector<2x96xf32>
    %cst_75 = arith.constant 5.000000e-01 : f32
    %324 = vector.broadcast %cst_75 : f32 to vector<2x96xf32>
    %325 = arith.mulf %324, %323 : vector<2x96xf32>
    %cst_76 = arith.constant 5.000000e-01 : f32
    %326 = vector.broadcast %cst_76 : f32 to vector<2x96xf32>
    %327 = arith.addf %325, %326 : vector<2x96xf32>
    %328 = vector.extract_strided_slice %319 {offsets = [0, 96], sizes = [2, 32], strides = [1, 1]} : vector<2x128xf32> to vector<2x32xf32>
    %329 = math.tanh %328 : vector<2x32xf32>
    %330 = vector.extract_strided_slice %327 {offsets = [0, 0], sizes = [2, 32], strides = [1, 1]} : vector<2x96xf32> to vector<2x32xf32>
    %331 = vector.extract_strided_slice %327 {offsets = [0, 32], sizes = [2, 32], strides = [1, 1]} : vector<2x96xf32> to vector<2x32xf32>
    %332 = vector.extract_strided_slice %327 {offsets = [0, 64], sizes = [2, 32], strides = [1, 1]} : vector<2x96xf32> to vector<2x32xf32>
    %333 = arith.mulf %331, %288 : vector<2x32xf32>
    %334 = arith.mulf %330, %329 : vector<2x32xf32>
    %335 = arith.addf %333, %334 : vector<2x32xf32>
    %336 = math.tanh %335 : vector<2x32xf32>
    %337 = arith.mulf %332, %336 : vector<2x32xf32>
    %c7_i32 = arith.constant 7 : i32
    %338 = arith.index_cast %c7_i32 : i32 to index
    %c0_77 = arith.constant 0 : index
    %c0_78 = arith.constant 0 : index
    %339 = vector.load %arg1[%338, %c0_77, %c0_78] : memref<8x2x128xbf16, #tpu.memory_space<vmem>>, vector<1x2x128xbf16>
    %340 = vector.shape_cast %339 : vector<1x2x128xbf16> to vector<2x128xbf16>
    %341 = arith.extf %340 : vector<2x128xbf16> to vector<2x128xf32>
    %342 = arith.truncf %315 : vector<2x32xf32> to vector<2x32xbf16>
    %cst_79 = arith.constant dense<0.000000e+00> : vector<2x128xf32>
    %343 = tpu.matmul %342, %0, %cst_79 {dimension_numbers = #tpu.dot_dimension_numbers<[1], [0], [0], [1], [0, 0, 1, 1], [], []>} : vector<2x32xbf16>, vector<32x128xbf16>, vector<2x128xf32> -> vector<2x128xf32>
    %344 = arith.addf %341, %343 : vector<2x128xf32>
    %345 = vector.extract_strided_slice %344 {offsets = [0, 0], sizes = [2, 96], strides = [1, 1]} : vector<2x128xf32> to vector<2x96xf32>
    %cst_80 = arith.constant 5.000000e-01 : f32
    %346 = vector.broadcast %cst_80 : f32 to vector<2x96xf32>
    %347 = arith.mulf %346, %345 : vector<2x96xf32>
    %348 = math.tanh %347 : vector<2x96xf32>
    %cst_81 = arith.constant 5.000000e-01 : f32
    %349 = vector.broadcast %cst_81 : f32 to vector<2x96xf32>
    %350 = arith.mulf %349, %348 : vector<2x96xf32>
    %cst_82 = arith.constant 5.000000e-01 : f32
    %351 = vector.broadcast %cst_82 : f32 to vector<2x96xf32>
    %352 = arith.addf %350, %351 : vector<2x96xf32>
    %353 = vector.extract_strided_slice %344 {offsets = [0, 96], sizes = [2, 32], strides = [1, 1]} : vector<2x128xf32> to vector<2x32xf32>
    %354 = math.tanh %353 : vector<2x32xf32>
    %355 = vector.extract_strided_slice %352 {offsets = [0, 0], sizes = [2, 32], strides = [1, 1]} : vector<2x96xf32> to vector<2x32xf32>
    %356 = vector.extract_strided_slice %352 {offsets = [0, 32], sizes = [2, 32], strides = [1, 1]} : vector<2x96xf32> to vector<2x32xf32>
    %357 = vector.extract_strided_slice %352 {offsets = [0, 64], sizes = [2, 32], strides = [1, 1]} : vector<2x96xf32> to vector<2x32xf32>
    %358 = arith.mulf %356, %313 : vector<2x32xf32>
    %359 = arith.mulf %355, %354 : vector<2x32xf32>
    %360 = arith.addf %358, %359 : vector<2x32xf32>
    %361 = math.tanh %360 : vector<2x32xf32>
    %362 = arith.mulf %357, %361 : vector<2x32xf32>
    %363 = tpu.concatenate %362, %337 in 1 : vector<2x32xf32>, vector<2x32xf32> -> vector<2x64xf32>
    %364 = arith.truncf %363 : vector<2x64xf32> to vector<2x64xbf16>
    %cst_83 = arith.constant dense<0.000000e+00> : vector<2x128xf32>
    %365 = tpu.matmul %364, %2, %cst_83 {dimension_numbers = #tpu.dot_dimension_numbers<[1], [0], [0], [1], [0, 0, 1, 1], [], []>} : vector<2x64xbf16>, vector<64x128xbf16>, vector<2x128xf32> -> vector<2x128xf32>
    %366 = arith.addf %365, %6 : vector<2x128xf32>
    %367 = vector.extract_strided_slice %366 {offsets = [0, 0], sizes = [2, 96], strides = [1, 1]} : vector<2x128xf32> to vector<2x96xf32>
    %cst_84 = arith.constant 5.000000e-01 : f32
    %368 = vector.broadcast %cst_84 : f32 to vector<2x96xf32>
    %369 = arith.mulf %368, %367 : vector<2x96xf32>
    %370 = math.tanh %369 : vector<2x96xf32>
    %cst_85 = arith.constant 5.000000e-01 : f32
    %371 = vector.broadcast %cst_85 : f32 to vector<2x96xf32>
    %372 = arith.mulf %371, %370 : vector<2x96xf32>
    %cst_86 = arith.constant 5.000000e-01 : f32
    %373 = vector.broadcast %cst_86 : f32 to vector<2x96xf32>
    %374 = arith.addf %372, %373 : vector<2x96xf32>
    %375 = vector.extract_strided_slice %366 {offsets = [0, 96], sizes = [2, 32], strides = [1, 1]} : vector<2x128xf32> to vector<2x32xf32>
    %376 = math.tanh %375 : vector<2x32xf32>
    %377 = vector.extract_strided_slice %374 {offsets = [0, 0], sizes = [2, 32], strides = [1, 1]} : vector<2x96xf32> to vector<2x32xf32>
    %378 = vector.extract_strided_slice %374 {offsets = [0, 32], sizes = [2, 32], strides = [1, 1]} : vector<2x96xf32> to vector<2x32xf32>
    %379 = vector.extract_strided_slice %374 {offsets = [0, 64], sizes = [2, 32], strides = [1, 1]} : vector<2x96xf32> to vector<2x32xf32>
    %380 = arith.mulf %378, %335 : vector<2x32xf32>
    %381 = arith.mulf %377, %376 : vector<2x32xf32>
    %382 = arith.addf %380, %381 : vector<2x32xf32>
    %383 = math.tanh %382 : vector<2x32xf32>
    %384 = arith.mulf %379, %383 : vector<2x32xf32>
    %c8_i32 = arith.constant 8 : i32
    %c0_87 = arith.constant 0 : index
    %c0_88 = arith.constant 0 : index
    %385 = vector.load %arg8[%c0_87, %c0_88] : memref<2x128xf32, #tpu.memory_space<vmem>>, vector<2x32xf32>
    tpu.vector_store %arg8[%c0_87, %c0_88], %362 {strides = array<i32>} : memref<2x128xf32, #tpu.memory_space<vmem>>, vector<2x32xf32>,
    %c0_89 = arith.constant 0 : index
    %c32 = arith.constant 32 : index
    %386 = vector.load %arg8[%c0_89, %c32] : memref<2x128xf32, #tpu.memory_space<vmem>>, vector<2x32xf32>
    tpu.vector_store %arg8[%c0_89, %c32], %360 {strides = array<i32>} : memref<2x128xf32, #tpu.memory_space<vmem>>, vector<2x32xf32>,
    %c0_90 = arith.constant 0 : index
    %c64 = arith.constant 64 : index
    %387 = vector.load %arg8[%c0_90, %c64] : memref<2x128xf32, #tpu.memory_space<vmem>>, vector<2x32xf32>
    tpu.vector_store %arg8[%c0_90, %c64], %384 {strides = array<i32>} : memref<2x128xf32, #tpu.memory_space<vmem>>, vector<2x32xf32>,
    %c0_91 = arith.constant 0 : index
    %c96 = arith.constant 96 : index
    %388 = vector.load %arg8[%c0_91, %c96] : memref<2x128xf32, #tpu.memory_space<vmem>>, vector<2x32xf32>
    tpu.vector_store %arg8[%c0_91, %c96], %382 {strides = array<i32>} : memref<2x128xf32, #tpu.memory_space<vmem>>, vector<2x32xf32>,
    %c0_92 = arith.constant 0 : index
    %c0_93 = arith.constant 0 : index
    %389 = vector.load %arg8[%c0_92, %c0_93] : memref<2x128xf32, #tpu.memory_space<vmem>>, vector<2x128xf32>
    %390 = math.tanh %389 : vector<2x128xf32>
    %391 = arith.truncf %390 : vector<2x128xf32> to vector<2x128xbf16>
    %c0_94 = arith.constant 0 : index
    %c0_95 = arith.constant 0 : index
    %392 = vector.load %arg5[%c0_94, %c0_95] : memref<128x128xbf16, #tpu.memory_space<vmem>>, vector<128x128xbf16>
    %cst_96 = arith.constant dense<0.000000e+00> : vector<2x128xf32>
    %393 = tpu.matmul %391, %392, %cst_96 {dimension_numbers = #tpu.dot_dimension_numbers<[1], [0], [0], [1], [0, 0, 1, 1], [], []>} : vector<2x128xbf16>, vector<128x128xbf16>, vector<2x128xf32> -> vector<2x128xf32>
    %c0_97 = arith.constant 0 : index
    %c0_98 = arith.constant 0 : index
    %394 = vector.load %arg6[%c0_97, %c0_98] : memref<1x128xf32, #tpu.memory_space<vmem>>, vector<1x128xf32>
    %395 = vector.broadcast %394 : vector<1x128xf32> to vector<2x128xf32>
    %396 = arith.addf %393, %395 : vector<2x128xf32>
    %c0_99 = arith.constant 0 : index
    %c0_100 = arith.constant 0 : index
    %397 = vector.load %arg7[%c0_99, %c0_100] : memref<2x128xf32, #tpu.memory_space<vmem>>, vector<2x128xf32>
    tpu.vector_store %arg7[%c0_99, %c0_100], %396 {strides = array<i32>} : memref<2x128xf32, #tpu.memory_space<vmem>>, vector<2x128xf32>,
    return
  }
  func.func @transform_0(%arg0: i32) -> (i32, i32, i32) {
    %c0_i32 = arith.constant 0 : i32
    %c0_i32_0 = arith.constant 0 : i32
    %c0_i32_1 = arith.constant 0 : i32
    return %c0_i32, %arg0, %c0_i32_0 : i32, i32, i32
  }
  func.func @transform_1(%arg0: i32) -> (i32, i32) {
    %c0_i32 = arith.constant 0 : i32
    %c0_i32_0 = arith.constant 0 : i32
    %c0_i32_1 = arith.constant 0 : i32
    return %c0_i32, %c0_i32_0 : i32, i32
  }
  func.func @transform_2(%arg0: i32) -> (i32, i32, i32) {
    %c0_i32 = arith.constant 0 : i32
    %c0_i32_0 = arith.constant 0 : i32
    %c0_i32_1 = arith.constant 0 : i32
    %c0_i32_2 = arith.constant 0 : i32
    return %c0_i32, %c0_i32_0, %c0_i32_1 : i32, i32, i32
  }
  func.func @transform_3(%arg0: i32) -> (i32, i32, i32) {
    %c0_i32 = arith.constant 0 : i32
    %c0_i32_0 = arith.constant 0 : i32
    %c0_i32_1 = arith.constant 0 : i32
    %c0_i32_2 = arith.constant 0 : i32
    return %c0_i32, %c0_i32_0, %c0_i32_1 : i32, i32, i32
  }
  func.func @transform_4(%arg0: i32) -> (i32, i32) {
    %c0_i32 = arith.constant 0 : i32
    %c0_i32_0 = arith.constant 0 : i32
    %c0_i32_1 = arith.constant 0 : i32
    return %c0_i32, %c0_i32_0 : i32, i32
  }
  func.func @transform_5(%arg0: i32) -> (i32, i32) {
    %c0_i32 = arith.constant 0 : i32
    %c0_i32_0 = arith.constant 0 : i32
    %c0_i32_1 = arith.constant 0 : i32
    return %c0_i32, %c0_i32_0 : i32, i32
  }
  func.func @transform_6(%arg0: i32) -> (i32, i32) {
    %c0_i32 = arith.constant 0 : i32
    %c0_i32_0 = arith.constant 0 : i32
    return %arg0, %c0_i32 : i32, i32
  }
}

</mosaic_0001>

<llo_original>
// kernel: _lambda_.1
$region0: #{_lambda_.1}
  #allocation0 [shape = 'u32[]', space=smem, size = 0x4, offset = 0x4, fixed_abs, tag = 'smem constant byte address 0x4 - core index']
  #allocation1 [shape = 'u32[144,128]{1,0:T(1,128)}', space=vmem, size = 0x12000, scoped, tag = 'internal scratch']
  #allocation2 [shape = 'f32[2,128]{1,0:T(2,128)}', space=vmem, size = 0x400, scoped, tag = 'scratch operand']
  %s0 = inlined_call_operand.vmem [shape: bf16[8,2,128], index: 0, kind: input, shape index: {}]
  %s1 = inlined_call_operand.vmem [shape: bf16[32,128], index: 1, kind: input, shape index: {}]
  %s2 = inlined_call_operand.vmem [shape: bf16[1,64,128], index: 2, kind: input, shape index: {}]
  %s3 = inlined_call_operand.vmem [shape: f32[2,1,128], index: 3, kind: input, shape index: {}]
  %s4 = inlined_call_operand.vmem [shape: bf16[128,128], index: 4, kind: input, shape index: {}]
  %s5 = inlined_call_operand.vmem [shape: f32[1,128], index: 5, kind: input, shape index: {}]
  %s6 = inlined_call_operand.hbm [shape: f32[2,128], index: 6, kind: output, shape index: {}]
  %s7 = sld [smem:[#allocation0]]
  $region34: #{_lambda_.1} parent=0
    _
  %s9 = ssub.s32 1, %s7
  %s10 = scalar_select 0, %s9, %s7
  $region1: #{_lambda_.1} parent=0
    #allocation3 [shape = 'u8[1024]{0}', space=vmem, size = 0x400, scoped, tag = 'output window, operand 0, single buffered']
    #allocation4 [shape = 's32[1]{0}', space=sflag, size = 0x4, scoped, tag = 'scoped memory for _lambda_.1']
    %11 = vsyncpa [#allocation4], 0
    // Predicated region
    $region2: #{_lambda_.1} parent=1 // pred_check
      _
    $region3: #{_lambda_.1} parent=1 // pred_check_branch
      %13 = sbr.rel (0) target = $region5
    $region4: #{_lambda_.1} parent=1 // pred_region
      _
    $region5: #{_lambda_.1} parent=1 // pred_fallthru
      _
    // Predicated region
    $region6: #{_lambda_.1} parent=1 // pred_check
      _
    $region7: #{_lambda_.1} parent=1 // pred_check_branch
      %15 = sbr.rel (0) target = $region9
    $region8: #{_lambda_.1} parent=1 // pred_region
      _
    $region9: #{_lambda_.1} parent=1 // pred_fallthru
      _
    // Predicated region
    $region10: #{_lambda_.1} parent=1 // pred_check
      _
    $region11: #{_lambda_.1} parent=1 // pred_check_branch
      %17 = sbr.rel (0) target = $region13
    $region12: #{_lambda_.1} parent=1 // pred_region
      _
    $region13: #{_lambda_.1} parent=1 // pred_fallthru
      _
    // Predicated region
    $region14: #{_lambda_.1} parent=1 // pred_check
      _
    $region15: #{_lambda_.1} parent=1 // pred_check_branch
      %19 = sbr.rel (0) target = $region17
    $region16: #{_lambda_.1} parent=1 // pred_region
      _
    $region17: #{_lambda_.1} parent=1 // pred_fallthru
      _
    // Predicated region
    $region18: #{_lambda_.1} parent=1 // pred_check
      _
    $region19: #{_lambda_.1} parent=1 // pred_check_branch
      %21 = sbr.rel (0) target = $region21
    $region20: #{_lambda_.1} parent=1 // pred_region
      _
    $region21: #{_lambda_.1} parent=1 // pred_fallthru
      _
    // Predicated region
    $region22: #{_lambda_.1} parent=1 // pred_check
      _
    $region23: #{_lambda_.1} parent=1 // pred_check_branch
      %23 = sbr.rel (0) target = $region25
    $region24: #{_lambda_.1} parent=1 // pred_region
      _
    $region25: #{_lambda_.1} parent=1 // pred_fallthru
      _
    %v25 = vld [vmem:[%s1] sm:$0xf]
    %v26 = vld [vmem:[%s1 + $0x4] sm:$0xf]
    %v27 = vld [vmem:[%s1 + $0x8] sm:$0xf]
    %v28 = vld [vmem:[%s1 + $0xc] sm:$0xf]
    %v29 = vld [vmem:[%s2] sm:$0xf]
    %v30 = vld [vmem:[%s2 + $0x4] sm:$0xf]
    %v31 = vld [vmem:[%s2 + $0x8] sm:$0xf]
    %v32 = vld [vmem:[%s2 + $0xc] sm:$0xf]
    %v33 = vld [vmem:[%s2 + $0x10] sm:$0xf]
    %v34 = vld [vmem:[%s2 + $0x14] sm:$0xf]
    %v35 = vld [vmem:[%s2 + $0x18] sm:$0xf]
    %v36 = vld [vmem:[%s2 + $0x1c] sm:$0xf]
    %s37 = scalar_lea.vmem %s3, 1
    %v38 = vld [vmem:[%s37] sm:$0x1]
    %v40 = vlaneseq
    %v41 = vshrl.u32 %v40, 7
    %v42 = vsub.s32 0, %v41
    %v43 = vrot.slane %v38, %v42
    %v45 = vld [vmem:[%s0] sm:$0x1]
    %v46 = vunpack.c.l.bf16 %v45
    %v51 = vunpack.c.l.b16 %v25
    %v52 = vunpack.c.l.b16 %v26
    %v53 = vunpack.c.l.b16 %v27
    %v54 = vunpack.c.l.b16 %v28
    %v55 = vpack.c.b16 %v52, %v51
    %v56 = vpack.c.b16 %v54, %v53
    %vm59 = vcmask 261120
    %v61 = vsel %vm59, 0, 0
    %63 = vmatprep.subr.bf16.mxu0 0
    %64 = vmatpush1.bf16.msra.mxu0 %v55
    %65 = vmatprep.subr.bf16.mxu0 0
    %66 = vmatpush1.bf16.msra.mxu0 %v56
    %67 = vmatprep.subr.bf16.mxu0 0
    %68 = vmatpush1.bf16.msra.mxu0 0
    %69 = vmatprep.subr.bf16.mxu0 0
    %70 = vmatpush1.bf16.msra.mxu0 0
    %71 = vmatprep.subr.bf16.mxu0 0
    %72 = vmatpush1.bf16.msra.mxu0 0
    %73 = vmatprep.subr.bf16.mxu0 0
    %74 = vmatpush1.bf16.msra.mxu0 0
    %75 = vmatprep.subr.bf16.mxu0 0
    %76 = vmatpush1.bf16.msra.mxu0 0
    %77 = vmatprep.subr.bf16.mxu0 0
    %78 = vmatpush1.bf16.msra.mxu0 0
    %79 = vmatprep.subr.bf16.mxu0 0
    %80 = vmatpush1.bf16.msra.mxu0 0
    %81 = vmatprep.subr.bf16.mxu0 0
    %82 = vmatpush1.bf16.msra.mxu0 0
    %83 = vmatprep.subr.bf16.mxu0 0
    %84 = vmatpush1.bf16.msra.mxu0 0
    %85 = vmatprep.subr.bf16.mxu0 0
    %86 = vmatpush1.bf16.msra.mxu0 0
    %87 = vmatprep.subr.bf16.mxu0 0
    %88 = vmatpush1.bf16.msra.mxu0 0
    %89 = vmatprep.subr.bf16.mxu0 0
    %90 = vmatpush1.bf16.msra.mxu0 0
    %91 = vmatprep.subr.bf16.mxu0 0
    %92 = vmatpush1.bf16.msra.mxu0 0
    %93 = vmatprep.subr.bf16.mxu0 0
    %94 = vmatpush1.bf16.msra.mxu0 0
    %95 = vmatprep.mubr.bf16.mxu0 0
    %96 = vmatmul.mubr.bf16.gmra.mrb[0].mxu0 %v61
    %v97 = vpop.f32.mrb[0].mxu0
    %v98 = vadd.f32 0.0, %v97
    %v99 = vpop.f32.mrb[0].mxu0
    %v100 = vpop.f32.mrb[0].mxu0
    %v101 = vpop.f32.mrb[0].mxu0
    %102 = vdwg.mxu0
    %v103 = vadd.f32 %v46, %v98
    %v104 = vmul.f32 %v103, 0.5
    %v105 = vtanh.pop %v104
    %v106 = vmul.f32 %v105, 0.5
    %v107 = vadd.f32 %v106, 0.5
    %v108 = vtanh.pop %v103
    %v109 = vmul.f32 %v107, 0.0
    %111 = vrot.lane.b32.xlu0 %v108, 32
    %v112 = vpop.permute.xlu0 %111
    %v114 = vmul.f32 %v107, %v112
    %116 = vrot.lane.b32.xlu0 %v114, 32
    %v117 = vpop.permute.xlu0 %116
    %v119 = vadd.f32 %v109, %v117
    %v120 = vtanh.pop %v119
    %122 = vrot.lane.b32.xlu0 %v120, 32
    %v123 = vpop.permute.xlu0 %122
    %v125 = vmul.f32 %v107, %v123
    %v128 = vunpack.c.l.s4 1983009808
    %v129 = vunpack.c.0.s8 %v128
    %v130 = vlaneseq
    %v131 = vshrl.u32 %v130, 7
    %v132 = vsub.s32 %v129, %v131
    %v133 = vrot.slane %v125, %v132
    %134 = vrot.lane.b32.xlu0 %v133, 64
    %v135 = vpop.permute.xlu0 %134
    %v137 = vsel %vm59, %v135, 0.0
    %v138 = vpack.c.bf16 %v137, %v137
    %v147 = vunpack.c.l.b16 %v29
    %v148 = vunpack.c.l.b16 %v30
    %v149 = vunpack.c.l.b16 %v31
    %v150 = vunpack.c.l.b16 %v32
    %v151 = vunpack.c.l.b16 %v33
    %v152 = vunpack.c.l.b16 %v34
    %v153 = vunpack.c.l.b16 %v35
    %v154 = vunpack.c.l.b16 %v36
    %v155 = vpack.c.b16 %v148, %v147
    %v156 = vpack.c.b16 %v150, %v149
    %v157 = vpack.c.b16 %v152, %v151
    %v158 = vpack.c.b16 %v154, %v153
    %vm163 = vcmask 523264
    %v165 = vsel %vm163, %v138, 0
    %167 = vmatprep.subr.bf16.mxu0 0
    %168 = vmatpush1.bf16.msra.mxu0 %v155
    %169 = vmatprep.subr.bf16.mxu0 0
    %170 = vmatpush1.bf16.msra.mxu0 %v156
    %171 = vmatprep.subr.bf16.mxu0 0
    %172 = vmatpush1.bf16.msra.mxu0 %v157
    %173 = vmatprep.subr.bf16.mxu0 0
    %174 = vmatpush1.bf16.msra.mxu0 %v158
    %175 = vmatprep.subr.bf16.mxu0 0
    %176 = vmatpush1.bf16.msra.mxu0 0
    %177 = vmatprep.subr.bf16.mxu0 0
    %178 = vmatpush1.bf16.msra.mxu0 0
    %179 = vmatprep.subr.bf16.mxu0 0
    %180 = vmatpush1.bf16.msra.mxu0 0
    %181 = vmatprep.subr.bf16.mxu0 0
    %182 = vmatpush1.bf16.msra.mxu0 0
    %183 = vmatprep.subr.bf16.mxu0 0
    %184 = vmatpush1.bf16.msra.mxu0 0
    %185 = vmatprep.subr.bf16.mxu0 0
    %186 = vmatpush1.bf16.msra.mxu0 0
    %187 = vmatprep.subr.bf16.mxu0 0
    %188 = vmatpush1.bf16.msra.mxu0 0
    %189 = vmatprep.subr.bf16.mxu0 0
    %190 = vmatpush1.bf16.msra.mxu0 0
    %191 = vmatprep.subr.bf16.mxu0 0
    %192 = vmatpush1.bf16.msra.mxu0 0
    %193 = vmatprep.subr.bf16.mxu0 0
    %194 = vmatpush1.bf16.msra.mxu0 0
    %195 = vmatprep.subr.bf16.mxu0 0
    %196 = vmatpush1.bf16.msra.mxu0 0
    %197 = vmatprep.subr.bf16.mxu0 0
    %198 = vmatpush1.bf16.msra.mxu0 0
    %199 = vmatprep.mubr.bf16.mxu0 0
    %200 = vmatmul.mubr.bf16.gmra.mrb[0].mxu0 %v165
    %v201 = vpop.f32.mrb[0].mxu0
    %v202 = vadd.f32 %v43, %v201
    %v203 = vpop.f32.mrb[0].mxu0
    %v204 = vpop.f32.mrb[0].mxu0
    %v205 = vpop.f32.mrb[0].mxu0
    %206 = vdwg.mxu0
    %v207 = vmul.f32 %v202, 0.5
    %v208 = vtanh.pop %v207
    %v209 = vmul.f32 %v208, 0.5
    %v210 = vadd.f32 %v209, 0.5
    %v211 = vtanh.pop %v202
    %v212 = vmul.f32 %v210, 0.0
    %214 = vrot.lane.b32.xlu0 %v211, 32
    %v215 = vpop.permute.xlu0 %214
    %v217 = vmul.f32 %v210, %v215
    %219 = vrot.lane.b32.xlu0 %v217, 32
    %v220 = vpop.permute.xlu0 %219
    %v222 = vadd.f32 %v212, %v220
    %v223 = vtanh.pop %v222
    %225 = vrot.lane.b32.xlu0 %v223, 32
    %v226 = vpop.permute.xlu0 %225
    %v228 = vmul.f32 %v210, %v226
    %s229 = scalar_lea.vmem %s0, 1
    %v230 = vld [vmem:[%s229] sm:$0x1]
    %v231 = vunpack.c.l.bf16 %v230
    %v232 = vpack.c.bf16 %v125, %v125
    %234 = vrot.lane.b32.xlu0 %v232, 64
    %v235 = vpop.permute.xlu0 %234
    %v237 = vsel %vm59, %v235, 0
    %239 = vmatprep.subr.bf16.mxu0 0
    %240 = vmatpush1.bf16.msra.mxu0 %v55
    %241 = vmatprep.subr.bf16.mxu0 0
    %242 = vmatpush1.bf16.msra.mxu0 %v56
    %243 = vmatprep.subr.bf16.mxu0 0
    %244 = vmatpush1.bf16.msra.mxu0 0
    %245 = vmatprep.subr.bf16.mxu0 0
    %246 = vmatpush1.bf16.msra.mxu0 0
    %247 = vmatprep.subr.bf16.mxu0 0
    %248 = vmatpush1.bf16.msra.mxu0 0
    %249 = vmatprep.subr.bf16.mxu0 0
    %250 = vmatpush1.bf16.msra.mxu0 0
    %251 = vmatprep.subr.bf16.mxu0 0
    %252 = vmatpush1.bf16.msra.mxu0 0
    %253 = vmatprep.subr.bf16.mxu0 0
    %254 = vmatpush1.bf16.msra.mxu0 0
    %255 = vmatprep.subr.bf16.mxu0 0
    %256 = vmatpush1.bf16.msra.mxu0 0
    %257 = vmatprep.subr.bf16.mxu0 0
    %258 = vmatpush1.bf16.msra.mxu0 0
    %259 = vmatprep.subr.bf16.mxu0 0
    %260 = vmatpush1.bf16.msra.mxu0 0
    %261 = vmatprep.subr.bf16.mxu0 0
    %262 = vmatpush1.bf16.msra.mxu0 0
    %263 = vmatprep.subr.bf16.mxu0 0
    %264 = vmatpush1.bf16.msra.mxu0 0
    %265 = vmatprep.subr.bf16.mxu0 0
    %266 = vmatpush1.bf16.msra.mxu0 0
    %267 = vmatprep.subr.bf16.mxu0 0
    %268 = vmatpush1.bf16.msra.mxu0 0
    %269 = vmatprep.subr.bf16.mxu0 0
    %270 = vmatpush1.bf16.msra.mxu0 0
    %271 = vmatprep.mubr.bf16.mxu0 0
    %272 = vmatmul.mubr.bf16.gmra.mrb[0].mxu0 %v237
    %v273 = vpop.f32.mrb[0].mxu0
    %v274 = vadd.f32 0.0, %v273
    %v275 = vpop.f32.mrb[0].mxu0
    %v276 = vpop.f32.mrb[0].mxu0
    %v277 = vpop.f32.mrb[0].mxu0
    %278 = vdwg.mxu0
    %v279 = vadd.f32 %v231, %v274
    %v280 = vmul.f32 %v279, 0.5
    %v281 = vtanh.pop %v280
    %v282 = vmul.f32 %v281, 0.5
    %v283 = vadd.f32 %v282, 0.5
    %v284 = vtanh.pop %v279
    %v285 = vmul.f32 %v283, %v119
    %287 = vrot.lane.b32.xlu0 %v284, 32
    %v288 = vpop.permute.xlu0 %287
    %v290 = vmul.f32 %v283, %v288
    %292 = vrot.lane.b32.xlu0 %v290, 32
    %v293 = vpop.permute.xlu0 %292
    %v295 = vadd.f32 %v285, %v293
    %v296 = vtanh.pop %v295
    %298 = vrot.lane.b32.xlu0 %v296, 32
    %v299 = vpop.permute.xlu0 %298
    %v301 = vmul.f32 %v283, %v299
    %v304 = vunpack.c.l.s4 1983009808
    %v305 = vunpack.c.0.s8 %v304
    %v306 = vlaneseq
    %v307 = vshrl.u32 %v306, 7
    %v308 = vsub.s32 %v305, %v307
    %v309 = vrot.slane %v301, %v308
    %310 = vrot.lane.b32.xlu0 %v309, 64
    %v311 = vpop.permute.xlu0 %310
    %314 = vrot.lane.b32.xlu0 %v228, 96
    %v315 = vpop.permute.xlu0 %314
    %v317 = vsel %vm59, %v311, %v315
    %v318 = vpack.c.bf16 %v317, %v317
    %v320 = vsel %vm163, %v318, 0
    %322 = vmatprep.subr.bf16.mxu0 0
    %323 = vmatpush1.bf16.msra.mxu0 %v155
    %324 = vmatprep.subr.bf16.mxu0 0
    %325 = vmatpush1.bf16.msra.mxu0 %v156
    %326 = vmatprep.subr.bf16.mxu0 0
    %327 = vmatpush1.bf16.msra.mxu0 %v157
    %328 = vmatprep.subr.bf16.mxu0 0
    %329 = vmatpush1.bf16.msra.mxu0 %v158
    %330 = vmatprep.subr.bf16.mxu0 0
    %331 = vmatpush1.bf16.msra.mxu0 0
    %332 = vmatprep.subr.bf16.mxu0 0
    %333 = vmatpush1.bf16.msra.mxu0 0
    %334 = vmatprep.subr.bf16.mxu0 0
    %335 = vmatpush1.bf16.msra.mxu0 0
    %336 = vmatprep.subr.bf16.mxu0 0
    %337 = vmatpush1.bf16.msra.mxu0 0
    %338 = vmatprep.subr.bf16.mxu0 0
    %339 = vmatpush1.bf16.msra.mxu0 0
    %340 = vmatprep.subr.bf16.mxu0 0
    %341 = vmatpush1.bf16.msra.mxu0 0
    %342 = vmatprep.subr.bf16.mxu0 0
    %343 = vmatpush1.bf16.msra.mxu0 0
    %344 = vmatprep.subr.bf16.mxu0 0
    %345 = vmatpush1.bf16.msra.mxu0 0
    %346 = vmatprep.subr.bf16.mxu0 0
    %347 = vmatpush1.bf16.msra.mxu0 0
    %348 = vmatprep.subr.bf16.mxu0 0
    %349 = vmatpush1.bf16.msra.mxu0 0
    %350 = vmatprep.subr.bf16.mxu0 0
    %351 = vmatpush1.bf16.msra.mxu0 0
    %352 = vmatprep.subr.bf16.mxu0 0
    %353 = vmatpush1.bf16.msra.mxu0 0
    %354 = vmatprep.mubr.bf16.mxu0 0
    %355 = vmatmul.mubr.bf16.gmra.mrb[0].mxu0 %v320
    %v356 = vpop.f32.mrb[0].mxu0
    %v357 = vadd.f32 %v43, %v356
    %v358 = vpop.f32.mrb[0].mxu0
    %v359 = vpop.f32.mrb[0].mxu0
    %v360 = vpop.f32.mrb[0].mxu0
    %361 = vdwg.mxu0
    %v362 = vmul.f32 %v357, 0.5
    %v363 = vtanh.pop %v362
    %v364 = vmul.f32 %v363, 0.5
    %v365 = vadd.f32 %v364, 0.5
    %v366 = vtanh.pop %v357
    %v367 = vmul.f32 %v365, %v222
    %369 = vrot.lane.b32.xlu0 %v366, 32
    %v370 = vpop.permute.xlu0 %369
    %v372 = vmul.f32 %v365, %v370
    %374 = vrot.lane.b32.xlu0 %v372, 32
    %v375 = vpop.permute.xlu0 %374
    %v377 = vadd.f32 %v367, %v375
    %v378 = vtanh.pop %v377
    %380 = vrot.lane.b32.xlu0 %v378, 32
    %v381 = vpop.permute.xlu0 %380
    %v383 = vmul.f32 %v365, %v381
    %s384 = scalar_lea.vmem %s0, 2
    %v385 = vld [vmem:[%s384] sm:$0x1]
    %v386 = vunpack.c.l.bf16 %v385
    %v387 = vpack.c.bf16 %v301, %v301
    %389 = vrot.lane.b32.xlu0 %v387, 64
    %v390 = vpop.permute.xlu0 %389
    %v392 = vsel %vm59, %v390, 0
    %394 = vmatprep.subr.bf16.mxu0 0
    %395 = vmatpush1.bf16.msra.mxu0 %v55
    %396 = vmatprep.subr.bf16.mxu0 0
    %397 = vmatpush1.bf16.msra.mxu0 %v56
    %398 = vmatprep.subr.bf16.mxu0 0
    %399 = vmatpush1.bf16.msra.mxu0 0
    %400 = vmatprep.subr.bf16.mxu0 0
    %401 = vmatpush1.bf16.msra.mxu0 0
    %402 = vmatprep.subr.bf16.mxu0 0
    %403 = vmatpush1.bf16.msra.mxu0 0
    %404 = vmatprep.subr.bf16.mxu0 0
    %405 = vmatpush1.bf16.msra.mxu0 0
    %406 = vmatprep.subr.bf16.mxu0 0
    %407 = vmatpush1.bf16.msra.mxu0 0
    %408 = vmatprep.subr.bf16.mxu0 0
    %409 = vmatpush1.bf16.msra.mxu0 0
    %410 = vmatprep.subr.bf16.mxu0 0
    %411 = vmatpush1.bf16.msra.mxu0 0
    %412 = vmatprep.subr.bf16.mxu0 0
    %413 = vmatpush1.bf16.msra.mxu0 0
    %414 = vmatprep.subr.bf16.mxu0 0
    %415 = vmatpush1.bf16.msra.mxu0 0
    %416 = vmatprep.subr.bf16.mxu0 0
    %417 = vmatpush1.bf16.msra.mxu0 0
    %418 = vmatprep.subr.bf16.mxu0 0
    %419 = vmatpush1.bf16.msra.mxu0 0
    %420 = vmatprep.subr.bf16.mxu0 0
    %421 = vmatpush1.bf16.msra.mxu0 0
    %422 = vmatprep.subr.bf16.mxu0 0
    %423 = vmatpush1.bf16.msra.mxu0 0
    %424 = vmatprep.subr.bf16.mxu0 0
    %425 = vmatpush1.bf16.msra.mxu0 0
    %426 = vmatprep.mubr.bf16.mxu0 0
    %427 = vmatmul.mubr.bf16.gmra.mrb[0].mxu0 %v392
    %v428 = vpop.f32.mrb[0].mxu0
    %v429 = vadd.f32 0.0, %v428
    %v430 = vpop.f32.mrb[0].mxu0
    %v431 = vpop.f32.mrb[0].mxu0
    %v432 = vpop.f32.mrb[0].mxu0
    %433 = vdwg.mxu0
    %v434 = vadd.f32 %v386, %v429
    %v435 = vmul.f32 %v434, 0.5
    %v436 = vtanh.pop %v435
    %v437 = vmul.f32 %v436, 0.5
    %v438 = vadd.f32 %v437, 0.5
    %v439 = vtanh.pop %v434
    %v440 = vmul.f32 %v438, %v295
    %442 = vrot.lane.b32.xlu0 %v439, 32
    %v443 = vpop.permute.xlu0 %442
    %v445 = vmul.f32 %v438, %v443
    %447 = vrot.lane.b32.xlu0 %v445, 32
    %v448 = vpop.permute.xlu0 %447
    %v450 = vadd.f32 %v440, %v448
    %v451 = vtanh.pop %v450
    %453 = vrot.lane.b32.xlu0 %v451, 32
    %v454 = vpop.permute.xlu0 %453
    %v456 = vmul.f32 %v438, %v454
    %v459 = vunpack.c.l.s4 1983009808
    %v460 = vunpack.c.0.s8 %v459
    %v461 = vlaneseq
    %v462 = vshrl.u32 %v461, 7
    %v463 = vsub.s32 %v460, %v462
    %v464 = vrot.slane %v456, %v463
    %465 = vrot.lane.b32.xlu0 %v464, 64
    %v466 = vpop.permute.xlu0 %465
    %469 = vrot.lane.b32.xlu0 %v383, 96
    %v470 = vpop.permute.xlu0 %469
    %v472 = vsel %vm59, %v466, %v470
    %v473 = vpack.c.bf16 %v472, %v472
    %v475 = vsel %vm163, %v473, 0
    %477 = vmatprep.subr.bf16.mxu0 0
    %478 = vmatpush1.bf16.msra.mxu0 %v155
    %479 = vmatprep.subr.bf16.mxu0 0
    %480 = vmatpush1.bf16.msra.mxu0 %v156
    %481 = vmatprep.subr.bf16.mxu0 0
    %482 = vmatpush1.bf16.msra.mxu0 %v157
    %483 = vmatprep.subr.bf16.mxu0 0
    %484 = vmatpush1.bf16.msra.mxu0 %v158
    %485 = vmatprep.subr.bf16.mxu0 0
    %486 = vmatpush1.bf16.msra.mxu0 0
    %487 = vmatprep.subr.bf16.mxu0 0
    %488 = vmatpush1.bf16.msra.mxu0 0
    %489 = vmatprep.subr.bf16.mxu0 0
    %490 = vmatpush1.bf16.msra.mxu0 0
    %491 = vmatprep.subr.bf16.mxu0 0
    %492 = vmatpush1.bf16.msra.mxu0 0
    %493 = vmatprep.subr.bf16.mxu0 0
    %494 = vmatpush1.bf16.msra.mxu0 0
    %495 = vmatprep.subr.bf16.mxu0 0
    %496 = vmatpush1.bf16.msra.mxu0 0
    %497 = vmatprep.subr.bf16.mxu0 0
    %498 = vmatpush1.bf16.msra.mxu0 0
    %499 = vmatprep.subr.bf16.mxu0 0
    %500 = vmatpush1.bf16.msra.mxu0 0
    %501 = vmatprep.subr.bf16.mxu0 0
    %502 = vmatpush1.bf16.msra.mxu0 0
    %503 = vmatprep.subr.bf16.mxu0 0
    %504 = vmatpush1.bf16.msra.mxu0 0
    %505 = vmatprep.subr.bf16.mxu0 0
    %506 = vmatpush1.bf16.msra.mxu0 0
    %507 = vmatprep.subr.bf16.mxu0 0
    %508 = vmatpush1.bf16.msra.mxu0 0
    %509 = vmatprep.mubr.bf16.mxu0 0
    %510 = vmatmul.mubr.bf16.gmra.mrb[0].mxu0 %v475
    %v511 = vpop.f32.mrb[0].mxu0
    %v512 = vadd.f32 %v43, %v511
    %v513 = vpop.f32.mrb[0].mxu0
    %v514 = vpop.f32.mrb[0].mxu0
    %v515 = vpop.f32.mrb[0].mxu0
    %516 = vdwg.mxu0
    %v517 = vmul.f32 %v512, 0.5
    %v518 = vtanh.pop %v517
    %v519 = vmul.f32 %v518, 0.5
    %v520 = vadd.f32 %v519, 0.5
    %v521 = vtanh.pop %v512
    %v522 = vmul.f32 %v520, %v377
    %524 = vrot.lane.b32.xlu0 %v521, 32
    %v525 = vpop.permute.xlu0 %524
    %v527 = vmul.f32 %v520, %v525
    %529 = vrot.lane.b32.xlu0 %v527, 32
    %v530 = vpop.permute.xlu0 %529
    %v532 = vadd.f32 %v522, %v530
    %v533 = vtanh.pop %v532
    %535 = vrot.lane.b32.xlu0 %v533, 32
    %v536 = vpop.permute.xlu0 %535
    %v538 = vmul.f32 %v520, %v536
    %s539 = scalar_lea.vmem %s0, 3
    %v540 = vld [vmem:[%s539] sm:$0x1]
    %v541 = vunpack.c.l.bf16 %v540
    %v542 = vpack.c.bf16 %v456, %v456
    %544 = vrot.lane.b32.xlu0 %v542, 64
    %v545 = vpop.permute.xlu0 %544
    %v547 = vsel %vm59, %v545, 0
    %549 = vmatprep.subr.bf16.mxu0 0
    %550 = vmatpush1.bf16.msra.mxu0 %v55
    %551 = vmatprep.subr.bf16.mxu0 0
    %552 = vmatpush1.bf16.msra.mxu0 %v56
    %553 = vmatprep.subr.bf16.mxu0 0
    %554 = vmatpush1.bf16.msra.mxu0 0
    %555 = vmatprep.subr.bf16.mxu0 0
    %556 = vmatpush1.bf16.msra.mxu0 0
    %557 = vmatprep.subr.bf16.mxu0 0
    %558 = vmatpush1.bf16.msra.mxu0 0
    %559 = vmatprep.subr.bf16.mxu0 0
    %560 = vmatpush1.bf16.msra.mxu0 0
    %561 = vmatprep.subr.bf16.mxu0 0
    %562 = vmatpush1.bf16.msra.mxu0 0
    %563 = vmatprep.subr.bf16.mxu0 0
    %564 = vmatpush1.bf16.msra.mxu0 0
    %565 = vmatprep.subr.bf16.mxu0 0
    %566 = vmatpush1.bf16.msra.mxu0 0
    %567 = vmatprep.subr.bf16.mxu0 0
    %568 = vmatpush1.bf16.msra.mxu0 0
    %569 = vmatprep.subr.bf16.mxu0 0
    %570 = vmatpush1.bf16.msra.mxu0 0
    %571 = vmatprep.subr.bf16.mxu0 0
    %572 = vmatpush1.bf16.msra.mxu0 0
    %573 = vmatprep.subr.bf16.mxu0 0
    %574 = vmatpush1.bf16.msra.mxu0 0
    %575 = vmatprep.subr.bf16.mxu0 0
    %576 = vmatpush1.bf16.msra.mxu0 0
    %577 = vmatprep.subr.bf16.mxu0 0
    %578 = vmatpush1.bf16.msra.mxu0 0
    %579 = vmatprep.subr.bf16.mxu0 0
    %580 = vmatpush1.bf16.msra.mxu0 0
    %581 = vmatprep.mubr.bf16.mxu0 0
    %582 = vmatmul.mubr.bf16.gmra.mrb[0].mxu0 %v547
    %v583 = vpop.f32.mrb[0].mxu0
    %v584 = vadd.f32 0.0, %v583
    %v585 = vpop.f32.mrb[0].mxu0
    %v586 = vpop.f32.mrb[0].mxu0
    %v587 = vpop.f32.mrb[0].mxu0
    %588 = vdwg.mxu0
    %v589 = vadd.f32 %v541, %v584
    %v590 = vmul.f32 %v589, 0.5
    %v591 = vtanh.pop %v590
    %v592 = vmul.f32 %v591, 0.5
    %v593 = vadd.f32 %v592, 0.5
    %v594 = vtanh.pop %v589
    %v595 = vmul.f32 %v593, %v450
    %597 = vrot.lane.b32.xlu0 %v594, 32
    %v598 = vpop.permute.xlu0 %597
    %v600 = vmul.f32 %v593, %v598
    %602 = vrot.lane.b32.xlu0 %v600, 32
    %v603 = vpop.permute.xlu0 %602
    %v605 = vadd.f32 %v595, %v603
    %v606 = vtanh.pop %v605
    %608 = vrot.lane.b32.xlu0 %v606, 32
    %v609 = vpop.permute.xlu0 %608
    %v611 = vmul.f32 %v593, %v609
    %v614 = vunpack.c.l.s4 1983009808
    %v615 = vunpack.c.0.s8 %v614
    %v616 = vlaneseq
    %v617 = vshrl.u32 %v616, 7
    %v618 = vsub.s32 %v615, %v617
    %v619 = vrot.slane %v611, %v618
    %620 = vrot.lane.b32.xlu0 %v619, 64
    %v621 = vpop.permute.xlu0 %620
    %624 = vrot.lane.b32.xlu0 %v538, 96
    %v625 = vpop.permute.xlu0 %624
    %v627 = vsel %vm59, %v621, %v625
    %v628 = vpack.c.bf16 %v627, %v627
    %v630 = vsel %vm163, %v628, 0
    %632 = vmatprep.subr.bf16.mxu0 0
    %633 = vmatpush1.bf16.msra.mxu0 %v155
    %634 = vmatprep.subr.bf16.mxu0 0
    %635 = vmatpush1.bf16.msra.mxu0 %v156
    %636 = vmatprep.subr.bf16.mxu0 0
    %637 = vmatpush1.bf16.msra.mxu0 %v157
    %638 = vmatprep.subr.bf16.mxu0 0
    %639 = vmatpush1.bf16.msra.mxu0 %v158
    %640 = vmatprep.subr.bf16.mxu0 0
    %641 = vmatpush1.bf16.msra.mxu0 0
    %642 = vmatprep.subr.bf16.mxu0 0
    %643 = vmatpush1.bf16.msra.mxu0 0
    %644 = vmatprep.subr.bf16.mxu0 0
    %645 = vmatpush1.bf16.msra.mxu0 0
    %646 = vmatprep.subr.bf16.mxu0 0
    %647 = vmatpush1.bf16.msra.mxu0 0
    %648 = vmatprep.subr.bf16.mxu0 0
    %649 = vmatpush1.bf16.msra.mxu0 0
    %650 = vmatprep.subr.bf16.mxu0 0
    %651 = vmatpush1.bf16.msra.mxu0 0
    %652 = vmatprep.subr.bf16.mxu0 0
    %653 = vmatpush1.bf16.msra.mxu0 0
    %654 = vmatprep.subr.bf16.mxu0 0
    %655 = vmatpush1.bf16.msra.mxu0 0
    %656 = vmatprep.subr.bf16.mxu0 0
    %657 = vmatpush1.bf16.msra.mxu0 0
    %658 = vmatprep.subr.bf16.mxu0 0
    %659 = vmatpush1.bf16.msra.mxu0 0
    %660 = vmatprep.subr.bf16.mxu0 0
    %661 = vmatpush1.bf16.msra.mxu0 0
    %662 = vmatprep.subr.bf16.mxu0 0
    %663 = vmatpush1.bf16.msra.mxu0 0
    %664 = vmatprep.mubr.bf16.mxu0 0
    %665 = vmatmul.mubr.bf16.gmra.mrb[0].mxu0 %v630
    %v666 = vpop.f32.mrb[0].mxu0
    %v667 = vadd.f32 %v43, %v666
    %v668 = vpop.f32.mrb[0].mxu0
    %v669 = vpop.f32.mrb[0].mxu0
    %v670 = vpop.f32.mrb[0].mxu0
    %671 = vdwg.mxu0
    %v672 = vmul.f32 %v667, 0.5
    %v673 = vtanh.pop %v672
    %v674 = vmul.f32 %v673, 0.5
    %v675 = vadd.f32 %v674, 0.5
    %v676 = vtanh.pop %v667
    %v677 = vmul.f32 %v675, %v532
    %679 = vrot.lane.b32.xlu0 %v676, 32
    %v680 = vpop.permute.xlu0 %679
    %v682 = vmul.f32 %v675, %v680
    %684 = vrot.lane.b32.xlu0 %v682, 32
    %v685 = vpop.permute.xlu0 %684
    %v687 = vadd.f32 %v677, %v685
    %v688 = vtanh.pop %v687
    %690 = vrot.lane.b32.xlu0 %v688, 32
    %v691 = vpop.permute.xlu0 %690
    %v693 = vmul.f32 %v675, %v691
    %s694 = scalar_lea.vmem %s0, 4
    %v695 = vld [vmem:[%s694] sm:$0x1]
    %v696 = vunpack.c.l.bf16 %v695
    %v697 = vpack.c.bf16 %v611, %v611
    %699 = vrot.lane.b32.xlu0 %v697, 64
    %v700 = vpop.permute.xlu0 %699
    %v702 = vsel %vm59, %v700, 0
    %704 = vmatprep.subr.bf16.mxu0 0
    %705 = vmatpush1.bf16.msra.mxu0 %v55
    %706 = vmatprep.subr.bf16.mxu0 0
    %707 = vmatpush1.bf16.msra.mxu0 %v56
    %708 = vmatprep.subr.bf16.mxu0 0
    %709 = vmatpush1.bf16.msra.mxu0 0
    %710 = vmatprep.subr.bf16.mxu0 0
    %711 = vmatpush1.bf16.msra.mxu0 0
    %712 = vmatprep.subr.bf16.mxu0 0
    %713 = vmatpush1.bf16.msra.mxu0 0
    %714 = vmatprep.subr.bf16.mxu0 0
    %715 = vmatpush1.bf16.msra.mxu0 0
    %716 = vmatprep.subr.bf16.mxu0 0
    %717 = vmatpush1.bf16.msra.mxu0 0
    %718 = vmatprep.subr.bf16.mxu0 0
    %719 = vmatpush1.bf16.msra.mxu0 0
    %720 = vmatprep.subr.bf16.mxu0 0
    %721 = vmatpush1.bf16.msra.mxu0 0
    %722 = vmatprep.subr.bf16.mxu0 0
    %723 = vmatpush1.bf16.msra.mxu0 0
    %724 = vmatprep.subr.bf16.mxu0 0
    %725 = vmatpush1.bf16.msra.mxu0 0
    %726 = vmatprep.subr.bf16.mxu0 0
    %727 = vmatpush1.bf16.msra.mxu0 0
    %728 = vmatprep.subr.bf16.mxu0 0
    %729 = vmatpush1.bf16.msra.mxu0 0
    %730 = vmatprep.subr.bf16.mxu0 0
    %731 = vmatpush1.bf16.msra.mxu0 0
    %732 = vmatprep.subr.bf16.mxu0 0
    %733 = vmatpush1.bf16.msra.mxu0 0
    %734 = vmatprep.subr.bf16.mxu0 0
    %735 = vmatpush1.bf16.msra.mxu0 0
    %736 = vmatprep.mubr.bf16.mxu0 0
    %737 = vmatmul.mubr.bf16.gmra.mrb[0].mxu0 %v702
    %v738 = vpop.f32.mrb[0].mxu0
    %v739 = vadd.f32 0.0, %v738
    %v740 = vpop.f32.mrb[0].mxu0
    %v741 = vpop.f32.mrb[0].mxu0
    %v742 = vpop.f32.mrb[0].mxu0
    %743 = vdwg.mxu0
    %v744 = vadd.f32 %v696, %v739
    %v745 = vmul.f32 %v744, 0.5
    %v746 = vtanh.pop %v745
    %v747 = vmul.f32 %v746, 0.5
    %v748 = vadd.f32 %v747, 0.5
    %v749 = vtanh.pop %v744
    %v750 = vmul.f32 %v748, %v605
    %752 = vrot.lane.b32.xlu0 %v749, 32
    %v753 = vpop.permute.xlu0 %752
    %v755 = vmul.f32 %v748, %v753
    %757 = vrot.lane.b32.xlu0 %v755, 32
    %v758 = vpop.permute.xlu0 %757
    %v760 = vadd.f32 %v750, %v758
    %v761 = vtanh.pop %v760
    %763 = vrot.lane.b32.xlu0 %v761, 32
    %v764 = vpop.permute.xlu0 %763
    %v766 = vmul.f32 %v748, %v764
    %v769 = vunpack.c.l.s4 1983009808
    %v770 = vunpack.c.0.s8 %v769
    %v771 = vlaneseq
    %v772 = vshrl.u32 %v771, 7
    %v773 = vsub.s32 %v770, %v772
    %v774 = vrot.slane %v766, %v773
    %775 = vrot.lane.b32.xlu0 %v774, 64
    %v776 = vpop.permute.xlu0 %775
    %779 = vrot.lane.b32.xlu0 %v693, 96
    %v780 = vpop.permute.xlu0 %779
    %v782 = vsel %vm59, %v776, %v780
    %v783 = vpack.c.bf16 %v782, %v782
    %v785 = vsel %vm163, %v783, 0
    %787 = vmatprep.subr.bf16.mxu0 0
    %788 = vmatpush1.bf16.msra.mxu0 %v155
    %789 = vmatprep.subr.bf16.mxu0 0
    %790 = vmatpush1.bf16.msra.mxu0 %v156
    %791 = vmatprep.subr.bf16.mxu0 0
    %792 = vmatpush1.bf16.msra.mxu0 %v157
    %793 = vmatprep.subr.bf16.mxu0 0
    %794 = vmatpush1.bf16.msra.mxu0 %v158
    %795 = vmatprep.subr.bf16.mxu0 0
    %796 = vmatpush1.bf16.msra.mxu0 0
    %797 = vmatprep.subr.bf16.mxu0 0
    %798 = vmatpush1.bf16.msra.mxu0 0
    %799 = vmatprep.subr.bf16.mxu0 0
    %800 = vmatpush1.bf16.msra.mxu0 0
    %801 = vmatprep.subr.bf16.mxu0 0
    %802 = vmatpush1.bf16.msra.mxu0 0
    %803 = vmatprep.subr.bf16.mxu0 0
    %804 = vmatpush1.bf16.msra.mxu0 0
    %805 = vmatprep.subr.bf16.mxu0 0
    %806 = vmatpush1.bf16.msra.mxu0 0
    %807 = vmatprep.subr.bf16.mxu0 0
    %808 = vmatpush1.bf16.msra.mxu0 0
    %809 = vmatprep.subr.bf16.mxu0 0
    %810 = vmatpush1.bf16.msra.mxu0 0
    %811 = vmatprep.subr.bf16.mxu0 0
    %812 = vmatpush1.bf16.msra.mxu0 0
    %813 = vmatprep.subr.bf16.mxu0 0
    %814 = vmatpush1.bf16.msra.mxu0 0
    %815 = vmatprep.subr.bf16.mxu0 0
    %816 = vmatpush1.bf16.msra.mxu0 0
    %817 = vmatprep.subr.bf16.mxu0 0
    %818 = vmatpush1.bf16.msra.mxu0 0
    %819 = vmatprep.mubr.bf16.mxu0 0
    %820 = vmatmul.mubr.bf16.gmra.mrb[0].mxu0 %v785
    %v821 = vpop.f32.mrb[0].mxu0
    %v822 = vadd.f32 %v43, %v821
    %v823 = vpop.f32.mrb[0].mxu0
    %v824 = vpop.f32.mrb[0].mxu0
    %v825 = vpop.f32.mrb[0].mxu0
    %826 = vdwg.mxu0
    %v827 = vmul.f32 %v822, 0.5
    %v828 = vtanh.pop %v827
    %v829 = vmul.f32 %v828, 0.5
    %v830 = vadd.f32 %v829, 0.5
    %v831 = vtanh.pop %v822
    %v832 = vmul.f32 %v830, %v687
    %834 = vrot.lane.b32.xlu0 %v831, 32
    %v835 = vpop.permute.xlu0 %834
    %v837 = vmul.f32 %v830, %v835
    %839 = vrot.lane.b32.xlu0 %v837, 32
    %v840 = vpop.permute.xlu0 %839
    %v842 = vadd.f32 %v832, %v840
    %v843 = vtanh.pop %v842
    %845 = vrot.lane.b32.xlu0 %v843, 32
    %v846 = vpop.permute.xlu0 %845
    %v848 = vmul.f32 %v830, %v846
    %s849 = scalar_lea.vmem %s0, 5
    %v850 = vld [vmem:[%s849] sm:$0x1]
    %v851 = vunpack.c.l.bf16 %v850
    %v852 = vpack.c.bf16 %v766, %v766
    %854 = vrot.lane.b32.xlu0 %v852, 64
    %v855 = vpop.permute.xlu0 %854
    %v857 = vsel %vm59, %v855, 0
    %859 = vmatprep.subr.bf16.mxu0 0
    %860 = vmatpush1.bf16.msra.mxu0 %v55
    %861 = vmatprep.subr.bf16.mxu0 0
    %862 = vmatpush1.bf16.msra.mxu0 %v56
    %863 = vmatprep.subr.bf16.mxu0 0
    %864 = vmatpush1.bf16.msra.mxu0 0
    %865 = vmatprep.subr.bf16.mxu0 0
    %866 = vmatpush1.bf16.msra.mxu0 0
    %867 = vmatprep.subr.bf16.mxu0 0
    %868 = vmatpush1.bf16.msra.mxu0 0
    %869 = vmatprep.subr.bf16.mxu0 0
    %870 = vmatpush1.bf16.msra.mxu0 0
    %871 = vmatprep.subr.bf16.mxu0 0
    %872 = vmatpush1.bf16.msra.mxu0 0
    %873 = vmatprep.subr.bf16.mxu0 0
    %874 = vmatpush1.bf16.msra.mxu0 0
    %875 = vmatprep.subr.bf16.mxu0 0
    %876 = vmatpush1.bf16.msra.mxu0 0
    %877 = vmatprep.subr.bf16.mxu0 0
    %878 = vmatpush1.bf16.msra.mxu0 0
    %879 = vmatprep.subr.bf16.mxu0 0
    %880 = vmatpush1.bf16.msra.mxu0 0
    %881 = vmatprep.subr.bf16.mxu0 0
    %882 = vmatpush1.bf16.msra.mxu0 0
    %883 = vmatprep.subr.bf16.mxu0 0
    %884 = vmatpush1.bf16.msra.mxu0 0
    %885 = vmatprep.subr.bf16.mxu0 0
    %886 = vmatpush1.bf16.msra.mxu0 0
    %887 = vmatprep.subr.bf16.mxu0 0
    %888 = vmatpush1.bf16.msra.mxu0 0
    %889 = vmatprep.subr.bf16.mxu0 0
    %890 = vmatpush1.bf16.msra.mxu0 0
    %891 = vmatprep.mubr.bf16.mxu0 0
    %892 = vmatmul.mubr.bf16.gmra.mrb[0].mxu0 %v857
    %v893 = vpop.f32.mrb[0].mxu0
    %v894 = vadd.f32 0.0, %v893
    %v895 = vpop.f32.mrb[0].mxu0
    %v896 = vpop.f32.mrb[0].mxu0
    %v897 = vpop.f32.mrb[0].mxu0
    %898 = vdwg.mxu0
    %v899 = vadd.f32 %v851, %v894
    %v900 = vmul.f32 %v899, 0.5
    %v901 = vtanh.pop %v900
    %v902 = vmul.f32 %v901, 0.5
    %v903 = vadd.f32 %v902, 0.5
    %v904 = vtanh.pop %v899
    %v905 = vmul.f32 %v903, %v760
    %907 = vrot.lane.b32.xlu0 %v904, 32
    %v908 = vpop.permute.xlu0 %907
    %v910 = vmul.f32 %v903, %v908
    %912 = vrot.lane.b32.xlu0 %v910, 32
    %v913 = vpop.permute.xlu0 %912
    %v915 = vadd.f32 %v905, %v913
    %v916 = vtanh.pop %v915
    %918 = vrot.lane.b32.xlu0 %v916, 32
    %v919 = vpop.permute.xlu0 %918
    %v921 = vmul.f32 %v903, %v919
    %v924 = vunpack.c.l.s4 1983009808
    %v925 = vunpack.c.0.s8 %v924
    %v926 = vlaneseq
    %v927 = vshrl.u32 %v926, 7
    %v928 = vsub.s32 %v925, %v927
    %v929 = vrot.slane %v921, %v928
    %930 = vrot.lane.b32.xlu0 %v929, 64
    %v931 = vpop.permute.xlu0 %930
    %934 = vrot.lane.b32.xlu0 %v848, 96
    %v935 = vpop.permute.xlu0 %934
    %v937 = vsel %vm59, %v931, %v935
    %v938 = vpack.c.bf16 %v937, %v937
    %v940 = vsel %vm163, %v938, 0
    %942 = vmatprep.subr.bf16.mxu0 0
    %943 = vmatpush1.bf16.msra.mxu0 %v155
    %944 = vmatprep.subr.bf16.mxu0 0
    %945 = vmatpush1.bf16.msra.mxu0 %v156
    %946 = vmatprep.subr.bf16.mxu0 0
    %947 = vmatpush1.bf16.msra.mxu0 %v157
    %948 = vmatprep.subr.bf16.mxu0 0
    %949 = vmatpush1.bf16.msra.mxu0 %v158
    %950 = vmatprep.subr.bf16.mxu0 0
    %951 = vmatpush1.bf16.msra.mxu0 0
    %952 = vmatprep.subr.bf16.mxu0 0
    %953 = vmatpush1.bf16.msra.mxu0 0
    %954 = vmatprep.subr.bf16.mxu0 0
    %955 = vmatpush1.bf16.msra.mxu0 0
    %956 = vmatprep.subr.bf16.mxu0 0
    %957 = vmatpush1.bf16.msra.mxu0 0
    %958 = vmatprep.subr.bf16.mxu0 0
    %959 = vmatpush1.bf16.msra.mxu0 0
    %960 = vmatprep.subr.bf16.mxu0 0
    %961 = vmatpush1.bf16.msra.mxu0 0
    %962 = vmatprep.subr.bf16.mxu0 0
    %963 = vmatpush1.bf16.msra.mxu0 0
    %964 = vmatprep.subr.bf16.mxu0 0
    %965 = vmatpush1.bf16.msra.mxu0 0
    %966 = vmatprep.subr.bf16.mxu0 0
    %967 = vmatpush1.bf16.msra.mxu0 0
    %968 = vmatprep.subr.bf16.mxu0 0
    %969 = vmatpush1.bf16.msra.mxu0 0
    %970 = vmatprep.subr.bf16.mxu0 0
    %971 = vmatpush1.bf16.msra.mxu0 0
    %972 = vmatprep.subr.bf16.mxu0 0
    %973 = vmatpush1.bf16.msra.mxu0 0
    %974 = vmatprep.mubr.bf16.mxu0 0
    %975 = vmatmul.mubr.bf16.gmra.mrb[0].mxu0 %v940
    %v976 = vpop.f32.mrb[0].mxu0
    %v977 = vadd.f32 %v43, %v976
    %v978 = vpop.f32.mrb[0].mxu0
    %v979 = vpop.f32.mrb[0].mxu0
    %v980 = vpop.f32.mrb[0].mxu0
    %981 = vdwg.mxu0
    %v982 = vmul.f32 %v977, 0.5
    %v983 = vtanh.pop %v982
    %v984 = vmul.f32 %v983, 0.5
    %v985 = vadd.f32 %v984, 0.5
    %v986 = vtanh.pop %v977
    %v987 = vmul.f32 %v985, %v842
    %989 = vrot.lane.b32.xlu0 %v986, 32
    %v990 = vpop.permute.xlu0 %989
    %v992 = vmul.f32 %v985, %v990
    %994 = vrot.lane.b32.xlu0 %v992, 32
    %v995 = vpop.permute.xlu0 %994
    %v997 = vadd.f32 %v987, %v995
    %v998 = vtanh.pop %v997
    %1000 = vrot.lane.b32.xlu0 %v998, 32
    %v1001 = vpop.permute.xlu0 %1000
    %v1003 = vmul.f32 %v985, %v1001
    %s1004 = scalar_lea.vmem %s0, 6
    %v1005 = vld [vmem:[%s1004] sm:$0x1]
    %v1006 = vunpack.c.l.bf16 %v1005
    %v1007 = vpack.c.bf16 %v921, %v921
    %1009 = vrot.lane.b32.xlu0 %v1007, 64
    %v1010 = vpop.permute.xlu0 %1009
    %v1012 = vsel %vm59, %v1010, 0
    %1014 = vmatprep.subr.bf16.mxu0 0
    %1015 = vmatpush1.bf16.msra.mxu0 %v55
    %1016 = vmatprep.subr.bf16.mxu0 0
    %1017 = vmatpush1.bf16.msra.mxu0 %v56
    %1018 = vmatprep.subr.bf16.mxu0 0
    %1019 = vmatpush1.bf16.msra.mxu0 0
    %1020 = vmatprep.subr.bf16.mxu0 0
    %1021 = vmatpush1.bf16.msra.mxu0 0
    %1022 = vmatprep.subr.bf16.mxu0 0
    %1023 = vmatpush1.bf16.msra.mxu0 0
    %1024 = vmatprep.subr.bf16.mxu0 0
    %1025 = vmatpush1.bf16.msra.mxu0 0
    %1026 = vmatprep.subr.bf16.mxu0 0
    %1027 = vmatpush1.bf16.msra.mxu0 0
    %1028 = vmatprep.subr.bf16.mxu0 0
    %1029 = vmatpush1.bf16.msra.mxu0 0
    %1030 = vmatprep.subr.bf16.mxu0 0
    %1031 = vmatpush1.bf16.msra.mxu0 0
    %1032 = vmatprep.subr.bf16.mxu0 0
    %1033 = vmatpush1.bf16.msra.mxu0 0
    %1034 = vmatprep.subr.bf16.mxu0 0
    %1035 = vmatpush1.bf16.msra.mxu0 0
    %1036 = vmatprep.subr.bf16.mxu0 0
    %1037 = vmatpush1.bf16.msra.mxu0 0
    %1038 = vmatprep.subr.bf16.mxu0 0
    %1039 = vmatpush1.bf16.msra.mxu0 0
    %1040 = vmatprep.subr.bf16.mxu0 0
    %1041 = vmatpush1.bf16.msra.mxu0 0
    %1042 = vmatprep.subr.bf16.mxu0 0
    %1043 = vmatpush1.bf16.msra.mxu0 0
    %1044 = vmatprep.subr.bf16.mxu0 0
    %1045 = vmatpush1.bf16.msra.mxu0 0
    %1046 = vmatprep.mubr.bf16.mxu0 0
    %1047 = vmatmul.mubr.bf16.gmra.mrb[0].mxu0 %v1012
    %v1048 = vpop.f32.mrb[0].mxu0
    %v1049 = vadd.f32 0.0, %v1048
    %v1050 = vpop.f32.mrb[0].mxu0
    %v1051 = vpop.f32.mrb[0].mxu0
    %v1052 = vpop.f32.mrb[0].mxu0
    %1053 = vdwg.mxu0
    %v1054 = vadd.f32 %v1006, %v1049
    %v1055 = vmul.f32 %v1054, 0.5
    %v1056 = vtanh.pop %v1055
    %v1057 = vmul.f32 %v1056, 0.5
    %v1058 = vadd.f32 %v1057, 0.5
    %v1059 = vtanh.pop %v1054
    %v1060 = vmul.f32 %v1058, %v915
    %1062 = vrot.lane.b32.xlu0 %v1059, 32
    %v1063 = vpop.permute.xlu0 %1062
    %v1065 = vmul.f32 %v1058, %v1063
    %1067 = vrot.lane.b32.xlu0 %v1065, 32
    %v1068 = vpop.permute.xlu0 %1067
    %v1070 = vadd.f32 %v1060, %v1068
    %v1071 = vtanh.pop %v1070
    %1073 = vrot.lane.b32.xlu0 %v1071, 32
    %v1074 = vpop.permute.xlu0 %1073
    %v1076 = vmul.f32 %v1058, %v1074
    %v1079 = vunpack.c.l.s4 1983009808
    %v1080 = vunpack.c.0.s8 %v1079
    %v1081 = vlaneseq
    %v1082 = vshrl.u32 %v1081, 7
    %v1083 = vsub.s32 %v1080, %v1082
    %v1084 = vrot.slane %v1076, %v1083
    %1085 = vrot.lane.b32.xlu0 %v1084, 64
    %v1086 = vpop.permute.xlu0 %1085
    %1089 = vrot.lane.b32.xlu0 %v1003, 96
    %v1090 = vpop.permute.xlu0 %1089
    %v1092 = vsel %vm59, %v1086, %v1090
    %v1093 = vpack.c.bf16 %v1092, %v1092
    %v1095 = vsel %vm163, %v1093, 0
    %1097 = vmatprep.subr.bf16.mxu0 0
    %1098 = vmatpush1.bf16.msra.mxu0 %v155
    %1099 = vmatprep.subr.bf16.mxu0 0
    %1100 = vmatpush1.bf16.msra.mxu0 %v156
    %1101 = vmatprep.subr.bf16.mxu0 0
    %1102 = vmatpush1.bf16.msra.mxu0 %v157
    %1103 = vmatprep.subr.bf16.mxu0 0
    %1104 = vmatpush1.bf16.msra.mxu0 %v158
    %1105 = vmatprep.subr.bf16.mxu0 0
    %1106 = vmatpush1.bf16.msra.mxu0 0
    %1107 = vmatprep.subr.bf16.mxu0 0
    %1108 = vmatpush1.bf16.msra.mxu0 0
    %1109 = vmatprep.subr.bf16.mxu0 0
    %1110 = vmatpush1.bf16.msra.mxu0 0
    %1111 = vmatprep.subr.bf16.mxu0 0
    %1112 = vmatpush1.bf16.msra.mxu0 0
    %1113 = vmatprep.subr.bf16.mxu0 0
    %1114 = vmatpush1.bf16.msra.mxu0 0
    %1115 = vmatprep.subr.bf16.mxu0 0
    %1116 = vmatpush1.bf16.msra.mxu0 0
    %1117 = vmatprep.subr.bf16.mxu0 0
    %1118 = vmatpush1.bf16.msra.mxu0 0
    %1119 = vmatprep.subr.bf16.mxu0 0
    %1120 = vmatpush1.bf16.msra.mxu0 0
    %1121 = vmatprep.subr.bf16.mxu0 0
    %1122 = vmatpush1.bf16.msra.mxu0 0
    %1123 = vmatprep.subr.bf16.mxu0 0
    %1124 = vmatpush1.bf16.msra.mxu0 0
    %1125 = vmatprep.subr.bf16.mxu0 0
    %1126 = vmatpush1.bf16.msra.mxu0 0
    %1127 = vmatprep.subr.bf16.mxu0 0
    %1128 = vmatpush1.bf16.msra.mxu0 0
    %1129 = vmatprep.mubr.bf16.mxu0 0
    %1130 = vmatmul.mubr.bf16.gmra.mrb[0].mxu0 %v1095
    %v1131 = vpop.f32.mrb[0].mxu0
    %v1132 = vadd.f32 %v43, %v1131
    %v1133 = vpop.f32.mrb[0].mxu0
    %v1134 = vpop.f32.mrb[0].mxu0
    %v1135 = vpop.f32.mrb[0].mxu0
    %1136 = vdwg.mxu0
    %v1137 = vmul.f32 %v1132, 0.5
    %v1138 = vtanh.pop %v1137
    %v1139 = vmul.f32 %v1138, 0.5
    %v1140 = vadd.f32 %v1139, 0.5
    %v1141 = vtanh.pop %v1132
    %v1142 = vmul.f32 %v1140, %v997
    %1144 = vrot.lane.b32.xlu0 %v1141, 32
    %v1145 = vpop.permute.xlu0 %1144
    %v1147 = vmul.f32 %v1140, %v1145
    %1149 = vrot.lane.b32.xlu0 %v1147, 32
    %v1150 = vpop.permute.xlu0 %1149
    %v1152 = vadd.f32 %v1142, %v1150
    %v1153 = vtanh.pop %v1152
    %1155 = vrot.lane.b32.xlu0 %v1153, 32
    %v1156 = vpop.permute.xlu0 %1155
    %v1158 = vmul.f32 %v1140, %v1156
    %s1159 = scalar_lea.vmem %s0, 7
    %v1160 = vld [vmem:[%s1159] sm:$0x1]
    %v1161 = vunpack.c.l.bf16 %v1160
    %v1162 = vpack.c.bf16 %v1076, %v1076
    %1164 = vrot.lane.b32.xlu0 %v1162, 64
    %v1165 = vpop.permute.xlu0 %1164
    %v1167 = vsel %vm59, %v1165, 0
    %1169 = vmatprep.subr.bf16.mxu0 0
    %1170 = vmatpush1.bf16.msra.mxu0 %v55
    %1171 = vmatprep.subr.bf16.mxu0 0
    %1172 = vmatpush1.bf16.msra.mxu0 %v56
    %1173 = vmatprep.subr.bf16.mxu0 0
    %1174 = vmatpush1.bf16.msra.mxu0 0
    %1175 = vmatprep.subr.bf16.mxu0 0
    %1176 = vmatpush1.bf16.msra.mxu0 0
    %1177 = vmatprep.subr.bf16.mxu0 0
    %1178 = vmatpush1.bf16.msra.mxu0 0
    %1179 = vmatprep.subr.bf16.mxu0 0
    %1180 = vmatpush1.bf16.msra.mxu0 0
    %1181 = vmatprep.subr.bf16.mxu0 0
    %1182 = vmatpush1.bf16.msra.mxu0 0
    %1183 = vmatprep.subr.bf16.mxu0 0
    %1184 = vmatpush1.bf16.msra.mxu0 0
    %1185 = vmatprep.subr.bf16.mxu0 0
    %1186 = vmatpush1.bf16.msra.mxu0 0
    %1187 = vmatprep.subr.bf16.mxu0 0
    %1188 = vmatpush1.bf16.msra.mxu0 0
    %1189 = vmatprep.subr.bf16.mxu0 0
    %1190 = vmatpush1.bf16.msra.mxu0 0
    %1191 = vmatprep.subr.bf16.mxu0 0
    %1192 = vmatpush1.bf16.msra.mxu0 0
    %1193 = vmatprep.subr.bf16.mxu0 0
    %1194 = vmatpush1.bf16.msra.mxu0 0
    %1195 = vmatprep.subr.bf16.mxu0 0
    %1196 = vmatpush1.bf16.msra.mxu0 0
    %1197 = vmatprep.subr.bf16.mxu0 0
    %1198 = vmatpush1.bf16.msra.mxu0 0
    %1199 = vmatprep.subr.bf16.mxu0 0
    %1200 = vmatpush1.bf16.msra.mxu0 0
    %1201 = vmatprep.mubr.bf16.mxu0 0
    %1202 = vmatmul.mubr.bf16.gmra.mrb[0].mxu0 %v1167
    %v1203 = vpop.f32.mrb[0].mxu0
    %v1204 = vadd.f32 0.0, %v1203
    %v1205 = vpop.f32.mrb[0].mxu0
    %v1206 = vpop.f32.mrb[0].mxu0
    %v1207 = vpop.f32.mrb[0].mxu0
    %1208 = vdwg.mxu0
    %v1209 = vadd.f32 %v1161, %v1204
    %v1210 = vmul.f32 %v1209, 0.5
    %v1211 = vtanh.pop %v1210
    %v1212 = vmul.f32 %v1211, 0.5
    %v1213 = vadd.f32 %v1212, 0.5
    %v1214 = vtanh.pop %v1209
    %v1215 = vmul.f32 %v1213, %v1070
    %1217 = vrot.lane.b32.xlu0 %v1214, 32
    %v1218 = vpop.permute.xlu0 %1217
    %v1220 = vmul.f32 %v1213, %v1218
    %1222 = vrot.lane.b32.xlu0 %v1220, 32
    %v1223 = vpop.permute.xlu0 %1222
    %v1225 = vadd.f32 %v1215, %v1223
    %v1226 = vtanh.pop %v1225
    %1228 = vrot.lane.b32.xlu0 %v1226, 32
    %v1229 = vpop.permute.xlu0 %1228
    %v1231 = vmul.f32 %v1213, %v1229
    %v1234 = vunpack.c.l.s4 1983009808
    %v1235 = vunpack.c.0.s8 %v1234
    %v1236 = vlaneseq
    %v1237 = vshrl.u32 %v1236, 7
    %v1238 = vsub.s32 %v1235, %v1237
    %v1239 = vrot.slane %v1231, %v1238
    %1240 = vrot.lane.b32.xlu0 %v1239, 64
    %v1241 = vpop.permute.xlu0 %1240
    %1244 = vrot.lane.b32.xlu0 %v1158, 96
    %v1245 = vpop.permute.xlu0 %1244
    %v1247 = vsel %vm59, %v1241, %v1245
    %v1248 = vpack.c.bf16 %v1247, %v1247
    %v1250 = vsel %vm163, %v1248, 0
    %1252 = vmatprep.subr.bf16.mxu0 0
    %1253 = vmatpush1.bf16.msra.mxu0 %v155
    %1254 = vmatprep.subr.bf16.mxu0 0
    %1255 = vmatpush1.bf16.msra.mxu0 %v156
    %1256 = vmatprep.subr.bf16.mxu0 0
    %1257 = vmatpush1.bf16.msra.mxu0 %v157
    %1258 = vmatprep.subr.bf16.mxu0 0
    %1259 = vmatpush1.bf16.msra.mxu0 %v158
    %1260 = vmatprep.subr.bf16.mxu0 0
    %1261 = vmatpush1.bf16.msra.mxu0 0
    %1262 = vmatprep.subr.bf16.mxu0 0
    %1263 = vmatpush1.bf16.msra.mxu0 0
    %1264 = vmatprep.subr.bf16.mxu0 0
    %1265 = vmatpush1.bf16.msra.mxu0 0
    %1266 = vmatprep.subr.bf16.mxu0 0
    %1267 = vmatpush1.bf16.msra.mxu0 0
    %1268 = vmatprep.subr.bf16.mxu0 0
    %1269 = vmatpush1.bf16.msra.mxu0 0
    %1270 = vmatprep.subr.bf16.mxu0 0
    %1271 = vmatpush1.bf16.msra.mxu0 0
    %1272 = vmatprep.subr.bf16.mxu0 0
    %1273 = vmatpush1.bf16.msra.mxu0 0
    %1274 = vmatprep.subr.bf16.mxu0 0
    %1275 = vmatpush1.bf16.msra.mxu0 0
    %1276 = vmatprep.subr.bf16.mxu0 0
    %1277 = vmatpush1.bf16.msra.mxu0 0
    %1278 = vmatprep.subr.bf16.mxu0 0
    %1279 = vmatpush1.bf16.msra.mxu0 0
    %1280 = vmatprep.subr.bf16.mxu0 0
    %1281 = vmatpush1.bf16.msra.mxu0 0
    %1282 = vmatprep.subr.bf16.mxu0 0
    %1283 = vmatpush1.bf16.msra.mxu0 0
    %1284 = vmatprep.mubr.bf16.mxu0 0
    %1285 = vmatmul.mubr.bf16.gmra.mrb[0].mxu0 %v1250
    %v1286 = vpop.f32.mrb[0].mxu0
    %v1287 = vadd.f32 %v43, %v1286
    %v1288 = vpop.f32.mrb[0].mxu0
    %v1289 = vpop.f32.mrb[0].mxu0
    %v1290 = vpop.f32.mrb[0].mxu0
    %1291 = vdwg.mxu0
    %v1292 = vmul.f32 %v1287, 0.5
    %v1293 = vtanh.pop %v1292
    %v1294 = vmul.f32 %v1293, 0.5
    %v1295 = vadd.f32 %v1294, 0.5
    %v1296 = vtanh.pop %v1287
    %v1297 = vmul.f32 %v1295, %v1152
    %1299 = vrot.lane.b32.xlu0 %v1296, 32
    %v1300 = vpop.permute.xlu0 %1299
    %v1302 = vmul.f32 %v1295, %v1300
    %1304 = vrot.lane.b32.xlu0 %v1302, 32
    %v1305 = vpop.permute.xlu0 %1304
    %v1307 = vadd.f32 %v1297, %v1305
    %v1308 = vtanh.pop %v1307
    %1310 = vrot.lane.b32.xlu0 %v1308, 32
    %v1311 = vpop.permute.xlu0 %1310
    %v1313 = vmul.f32 %v1295, %v1311
    %vm1314 = vcmask 254976
    %1315 = vst.msk [vmem:[#allocation2] sm:$0x3] %vm1314, %v1241
    %vm1316 = vcmask 517376
    %1317 = vst.msk [vmem:[#allocation2] sm:$0x3] %vm1316, %v1225
    %vm1318 = vcmask 779776
    %1319 = vst.msk [vmem:[#allocation2] sm:$0x3] %vm1318, %v1313
    %1321 = vrot.lane.b32.xlu0 %v1307, 64
    %v1322 = vpop.permute.xlu0 %1321
    %vm1324 = vcmask 1042176
    %1325 = vst.msk [vmem:[#allocation2] sm:$0x3] %vm1324, %v1322
    %v1326 = vld [vmem:[#allocation2] sm:$0x3]
    %v1327 = vtanh.pop %v1326
    %v1328 = vpack.c.bf16 %v1327, %v1327
    %v1329 = vld [vmem:[%s4] sm:$0xf]
    %v1330 = vld [vmem:[%s4 + $0x4] sm:$0xf]
    %v1331 = vld [vmem:[%s4 + $0x8] sm:$0xf]
    %v1332 = vld [vmem:[%s4 + $0xc] sm:$0xf]
    %v1333 = vld [vmem:[%s4 + $0x10] sm:$0xf]
    %v1334 = vld [vmem:[%s4 + $0x14] sm:$0xf]
    %v1335 = vld [vmem:[%s4 + $0x18] sm:$0xf]
    %v1336 = vld [vmem:[%s4 + $0x1c] sm:$0xf]
    %v1337 = vld [vmem:[%s4 + $0x20] sm:$0xf]
    %v1338 = vld [vmem:[%s4 + $0x24] sm:$0xf]
    %v1339 = vld [vmem:[%s4 + $0x28] sm:$0xf]
    %v1340 = vld [vmem:[%s4 + $0x2c] sm:$0xf]
    %v1341 = vld [vmem:[%s4 + $0x30] sm:$0xf]
    %v1342 = vld [vmem:[%s4 + $0x34] sm:$0xf]
    %v1343 = vld [vmem:[%s4 + $0x38] sm:$0xf]
    %v1344 = vld [vmem:[%s4 + $0x3c] sm:$0xf]
    %v1345 = vld [vmem:[%s5] sm:$0x1]
    %v1347 = vlaneseq
    %v1348 = vshrl.u32 %v1347, 7
    %v1349 = vsub.s32 0, %v1348
    %v1350 = vrot.slane %v1345, %v1349
    %v1368 = vunpack.c.l.b16 %v1329
    %v1369 = vunpack.c.l.b16 %v1330
    %v1370 = vunpack.c.l.b16 %v1331
    %v1371 = vunpack.c.l.b16 %v1332
    %v1372 = vunpack.c.l.b16 %v1333
    %v1373 = vunpack.c.l.b16 %v1334
    %v1374 = vunpack.c.l.b16 %v1335
    %v1375 = vunpack.c.l.b16 %v1336
    %v1376 = vunpack.c.l.b16 %v1337
    %v1377 = vunpack.c.l.b16 %v1338
    %v1378 = vunpack.c.l.b16 %v1339
    %v1379 = vunpack.c.l.b16 %v1340
    %v1380 = vunpack.c.l.b16 %v1341
    %v1381 = vunpack.c.l.b16 %v1342
    %v1382 = vunpack.c.l.b16 %v1343
    %v1383 = vunpack.c.l.b16 %v1344
    %v1384 = vpack.c.b16 %v1369, %v1368
    %v1385 = vpack.c.b16 %v1371, %v1370
    %v1386 = vpack.c.b16 %v1373, %v1372
    %v1387 = vpack.c.b16 %v1375, %v1374
    %v1388 = vpack.c.b16 %v1377, %v1376
    %v1389 = vpack.c.b16 %v1379, %v1378
    %v1390 = vpack.c.b16 %v1381, %v1380
    %v1391 = vpack.c.b16 %v1383, %v1382
    %1400 = vmatprep.subr.bf16.mxu0 0
    %1401 = vmatpush1.bf16.msra.mxu0 %v1384
    %1402 = vmatprep.subr.bf16.mxu0 0
    %1403 = vmatpush1.bf16.msra.mxu0 %v1385
    %1404 = vmatprep.subr.bf16.mxu0 0
    %1405 = vmatpush1.bf16.msra.mxu0 %v1386
    %1406 = vmatprep.subr.bf16.mxu0 0
    %1407 = vmatpush1.bf16.msra.mxu0 %v1387
    %1408 = vmatprep.subr.bf16.mxu0 0
    %1409 = vmatpush1.bf16.msra.mxu0 %v1388
    %1410 = vmatprep.subr.bf16.mxu0 0
    %1411 = vmatpush1.bf16.msra.mxu0 %v1389
    %1412 = vmatprep.subr.bf16.mxu0 0
    %1413 = vmatpush1.bf16.msra.mxu0 %v1390
    %1414 = vmatprep.subr.bf16.mxu0 0
    %1415 = vmatpush1.bf16.msra.mxu0 %v1391
    %1416 = vmatprep.subr.bf16.mxu0 0
    %1417 = vmatpush1.bf16.msra.mxu0 0
    %1418 = vmatprep.subr.bf16.mxu0 0
    %1419 = vmatpush1.bf16.msra.mxu0 0
    %1420 = vmatprep.subr.bf16.mxu0 0
    %1421 = vmatpush1.bf16.msra.mxu0 0
    %1422 = vmatprep.subr.bf16.mxu0 0
    %1423 = vmatpush1.bf16.msra.mxu0 0
    %1424 = vmatprep.subr.bf16.mxu0 0
    %1425 = vmatpush1.bf16.msra.mxu0 0
    %1426 = vmatprep.subr.bf16.mxu0 0
    %1427 = vmatpush1.bf16.msra.mxu0 0
    %1428 = vmatprep.subr.bf16.mxu0 0
    %1429 = vmatpush1.bf16.msra.mxu0 0
    %1430 = vmatprep.subr.bf16.mxu0 0
    %1431 = vmatpush1.bf16.msra.mxu0 0
    %1432 = vmatprep.mubr.bf16.mxu0 0
    %1433 = vmatmul.mubr.bf16.gmra.mrb[0].mxu0 %v1328
    %v1434 = vpop.f32.mrb[0].mxu0
    %v1435 = vadd.f32 %v1350, %v1434
    %v1436 = vpop.f32.mrb[0].mxu0
    %v1437 = vpop.f32.mrb[0].mxu0
    %v1438 = vpop.f32.mrb[0].mxu0
    %1439 = vdwg.mxu0
    %1440 = vst [vmem:[#allocation3] sm:$0x3] %v1435
    // Predicated region
    $region26: #{_lambda_.1} parent=1 // pred_check
      _
    $region27: #{_lambda_.1} parent=1 // pred_check_branch
      %1442 = sbr.rel (0) target = $region29
    $region28: #{_lambda_.1} parent=1 // pred_region
      %s1444 = ssub.s32 32, 32
      %1445 = vsyncadd [#allocation4], %s1444
      %s1447 = sshll.u32 [#allocation3], 4
      %s1448 = int_to_ptr.vmem [resolvable:$true] %s1447
      %1450 = dma.vmem_to_hbm [thread:$0]  %s1448, 32, %s6, [#allocation4]
    $region29: #{_lambda_.1} parent=1 // pred_fallthru
      _
    // Predicated region
    $region30: #{_lambda_.1} parent=1 // pred_check
      _
    $region31: #{_lambda_.1} parent=1 // pred_check_branch
      %1452 = sbr.rel (0) target = $region33
    $region32: #{_lambda_.1} parent=1 // pred_region
      %1453 = dma.done [#allocation4], 32
    $region33: #{_lambda_.1} parent=1 // pred_fallthru
      _
    %1454 = vsyncpa [#allocation4], 1

</llo_original>
